<compile_context>
chip_gen: v6e
topology: v6e:2x2x1
jax: 0.10.0
libtpu: 0.0.40
codegen_flags: <defaults>
</compile_context>

<pallas_src>
import math
import functools

import numpy as np
import jax
import jax.numpy as jnp
from jax import lax
from jax.experimental import pallas as pl
from jax.experimental.pallas import tpu as pltpu

_LN_EPS = 1e-5


@functools.lru_cache(maxsize=None)
def _vmem_limit_bytes():
    """Generation-aware VMEM limit: ~51 MiB on v7x, ~102 MiB on v5e/v6e."""
    try:
        cap = int(pltpu.get_tpu_info().vmem_capacity_bytes)
    except Exception:
        cap = 64 * 1024 * 1024          # conservative fallback, valid on every gen
    return (cap * 4) // 5


def _pick_tile(total, target):
    """Largest divisor of `total` that is <= target and a multiple of 8 (else total)."""
    if total <= target:
        return total
    t = min(target, total)
    t -= t % 8
    while t >= 8:
        if total % t == 0:
            return t
        t -= 8
    return total


def _norm(z):
    """LayerNorm without affine (gamma/beta are folded into the following Linear)."""
    mu = jnp.mean(z, axis=-1, keepdims=True)
    var = jnp.mean((z - mu) ** 2, axis=-1, keepdims=True)
    return (z - mu) * lax.rsqrt(var + _LN_EPS)


# --------------------------------------------------------------------------------------
# Kernel 1: fused LayerNorm + combined Q/K/V projection, row-tiled over (B*S, E).
# --------------------------------------------------------------------------------------
def qkv_proj_kernel(x_ref, wqkv_ref, bqkv_ref, q_ref, k_ref, v_ref, *, all_head_dim):
    x = x_ref[...].astype(jnp.float32)                         # (Tr, E)
    xn = _norm(x).astype(wqkv_ref.dtype)                       # LN stats computed once
    y = jnp.dot(xn, wqkv_ref[...],
                preferred_element_type=jnp.float32) + bqkv_ref[0]   # (Tr, 3*HD)
    hd = all_head_dim
    q_ref[...] = y[:, :hd].astype(q_ref.dtype)
    k_ref[...] = y[:, hd:2 * hd].astype(k_ref.dtype)
    v_ref[...] = y[:, 2 * hd:].astype(v_ref.dtype)


# --------------------------------------------------------------------------------------
# Kernel 2: flash attention, grid = (batch, q_tiles, k_tiles), (B, S, H*D) layout in/out.
# --------------------------------------------------------------------------------------
def flash_attn_kernel(q_ref, k_ref, v_ref, o_ref, m_sc, l_sc, acc_sc,
                      *, seq_len, num_heads, head_dim, matmul_dtype, recip_approx):
    qi = pl.program_id(1)
    ki = pl.program_id(2)
    H, D = num_heads, head_dim
    Tq = q_ref.shape[1]
    Tk = k_ref.shape[1]

    @pl.when(ki == 0)
    def _():
        m_sc[...] = jnp.full(m_sc.shape, -jnp.inf, dtype=m_sc.dtype)
        l_sc[...] = jnp.zeros(l_sc.shape, dtype=l_sc.dtype)
        acc_sc[...] = jnp.zeros(acc_sc.shape, dtype=acc_sc.dtype)

    def split_heads(t2d):                       # (T, H*D) -> (H, T, D), in-VMEM only
        return jnp.stack([t2d[:, h * D:(h + 1) * D] for h in range(H)], axis=0)

    q = split_heads(q_ref[0])                   # already matmul_dtype from kernel 1
    k = split_heads(k_ref[0])
    v = split_heads(v_ref[0])

    # Softmax scale already folded into Wq — no per-tile multiply.
    s = jnp.einsum('hqd,hkd->hqk', q, k, preferred_element_type=jnp.float32)

    # Mask mirrors torch.triu(-999, diagonal = mask_offset + S - 1), mask_offset = 0.
    # Built once at (Tq, Tk) and broadcast over heads.
    row = qi * Tq + lax.broadcasted_iota(jnp.int32, (Tq, Tk), 0)
    col = ki * Tk + lax.broadcasted_iota(jnp.int32, (Tq, Tk), 1)
    band = (col - row >= seq_len - 1)[None, :, :]
    s = jnp.where(band, s - 999.0, s)

    # Online softmax accumulation over k-tiles (f32 state — v5e safe).
    m_prev = m_sc[...]
    m_new = jnp.maximum(m_prev, jnp.max(s, axis=-1, keepdims=True))
    alpha = jnp.exp(m_prev - m_new)
    p = jnp.exp(s - m_new)
    l_sc[...] = alpha * l_sc[...] + jnp.sum(p, axis=-1, keepdims=True)
    acc_sc[...] = alpha * acc_sc[...] + jnp.einsum(
        'hqk,hkd->hqd', p.astype(matmul_dtype), v, preferred_element_type=jnp.float32)
    m_sc[...] = m_new

    @pl.when(ki == pl.num_programs(2) - 1)
    def _():
        inv_l = pl.reciprocal(l_sc[...], approx=recip_approx)   # (H, Tq, 1)
        out = (acc_sc[...] * inv_l).astype(o_ref.dtype)         # (H, Tq, D)
        # Merge heads back into the lane-dense (Tq, H*D) output block.
        for h in range(H):
            o_ref[0, :, h * D:(h + 1) * D] = out[h]


# --------------------------------------------------------------------------------------
# Kernel 3: head aggregation + residual + MLP, row-tiled over (B*S, ...).
# --------------------------------------------------------------------------------------
def agg_mlp_kernel(att_ref, x_ref, wagg_ref, bagg_ref, w1_ref, b1_ref, w2_ref, b2_ref,
                   o_ref):
    x = x_ref[...].astype(jnp.float32)                          # (Tr, E)
    attended = (jnp.dot(att_ref[...], wagg_ref[...],
                        preferred_element_type=jnp.float32) + bagg_ref[0] + x)
    h = _norm(attended).astype(w1_ref.dtype)                    # MLP LN affine folded in w1
    h = jnp.dot(h, w1_ref[...], preferred_element_type=jnp.float32) + b1_ref[0]
    # TODO(synk): PyTorch nn.GELU default is exact erf; tanh approximation used here.
    h = jax.nn.gelu(h, approximate=True).astype(w2_ref.dtype)
    out = (jnp.dot(h, w2_ref[...], preferred_element_type=jnp.float32)
           + b2_ref[0] + attended)
    o_ref[...] = out.astype(o_ref.dtype)


# --------------------------------------------------------------------------------------
# Fused single-kernel path for small problems (everything VMEM-resident, grid over batch)
# --------------------------------------------------------------------------------------
def fused_small_kernel(x_ref, wqkv_ref, bqkv_ref, wagg_ref, bagg_ref,
                       w1_ref, b1_ref, w2_ref, b2_ref, o_ref,
                       *, num_heads, head_dim, recip_approx):
    H, D = num_heads, head_dim
    HD = H * D
    mdt = wqkv_ref.dtype
    x = x_ref[0].astype(jnp.float32)                            # (S, E)
    S = x.shape[0]

    xn = _norm(x).astype(mdt)
    qkv = jnp.dot(xn, wqkv_ref[...], preferred_element_type=jnp.float32) + bqkv_ref[0]

    def split_heads(t2d):                                       # (S, H*D) -> (H, S, D)
        return jnp.stack([t2d[:, h * D:(h + 1) * D] for h in range(H)], axis=0)

    q = split_heads(qkv[:, :HD]).astype(mdt)
    k = split_heads(qkv[:, HD:2 * HD]).astype(mdt)
    v = split_heads(qkv[:, 2 * HD:]).astype(mdt)

    s = jnp.einsum('hqd,hkd->hqk', q, k, preferred_element_type=jnp.float32)
    row = lax.broadcasted_iota(jnp.int32, (S, S), 0)
    col = lax.broadcasted_iota(jnp.int32, (S, S), 1)
    s = jnp.where((col - row >= S - 1)[None, :, :], s - 999.0, s)

    m = jnp.max(s, axis=-1, keepdims=True)
    p = jnp.exp(s - m)
    l = jnp.sum(p, axis=-1, keepdims=True)
    att = jnp.einsum('hqk,hkd->hqd', p.astype(mdt), v,
                     preferred_element_type=jnp.float32)
    att = (att * pl.reciprocal(l, approx=recip_approx)).astype(mdt)   # (H, S, D)

    # Head merge expressed as a sum of per-head matmuls (no lane-dim concat needed).
    wagg = wagg_ref[...]
    attended = bagg_ref[0] + x                                   # (S, E) f32
    for h in range(H):
        attended = attended + jnp.dot(att[h], wagg[h * D:(h + 1) * D, :],
                                      preferred_element_type=jnp.float32)

    h1 = _norm(attended).astype(mdt)
    h1 = jnp.dot(h1, w1_ref[...], preferred_element_type=jnp.float32) + b1_ref[0]
    # TODO(synk): exact-erf GELU (PyTorch default) approximated with tanh.
    h1 = jax.nn.gelu(h1, approximate=True).astype(mdt)
    out = (jnp.dot(h1, w2_ref[...], preferred_element_type=jnp.float32)
           + b2_ref[0] + attended)
    o_ref[0] = out.astype(o_ref.dtype)


# --------------------------------------------------------------------------------------
# Parameter folding (done once in the wrapper, not per grid step)
# --------------------------------------------------------------------------------------
def _prepare_params(params, E, matmul_dtype):
    (lnq_g, lnq_b, wq, bq, lnk_g, lnk_b, wk, bk, lnv_g, lnv_b, wv, bv,
     wagg, bagg, lnm_g, lnm_b, w1, b1, w2, b2) = params
    scale = 1.0 / math.sqrt(E)          # module scales scores by 1/sqrt(input_embedding_dim)

    def fold(g, beta, w, b):
        # ln(x) @ W + b  ==  norm(x) @ (g[:,None]*W) + (beta @ W + b)
        return g.reshape(-1, 1) * w, b + beta @ w

    wq_f, bq_f = fold(lnq_g, lnq_b, wq, bq)
    wk_f, bk_f = fold(lnk_g, lnk_b, wk, bk)
    wv_f, bv_f = fold(lnv_g, lnv_b, wv, bv)
    # Softmax scale folded into the q projection; q/k/v fused into one wide matmul.
    wqkv = jnp.concatenate([wq_f * scale, wk_f, wv_f], axis=1).astype(matmul_dtype)
    bqkv = jnp.concatenate([bq_f * scale, bk_f, bv_f], axis=1).astype(jnp.float32)
    w1_f, b1_f = fold(lnm_g, lnm_b, w1, b1)
    return (wqkv, bqkv,
            wagg.astype(matmul_dtype), bagg.astype(jnp.float32),
            w1_f.astype(matmul_dtype), b1_f.astype(jnp.float32),
            w2.astype(matmul_dtype), b2.astype(jnp.float32))


# --------------------------------------------------------------------------------------
# Wrapper
# --------------------------------------------------------------------------------------
def multihead_causal_attention(x, params, *, num_heads, head_dim,
                               matmul_dtype=jnp.bfloat16,
                               q_tile=128, k_tile=128, row_tile=512,
                               fused=None):
    matmul_dtype = np.dtype(matmul_dtype)
    recip_approx = matmul_dtype == np.dtype(jnp.bfloat16)

    B, S, E = x.shape
    H, D = num_heads, head_dim
    HD = H * D
    rows = B * S
    E2 = params[16].shape[1]
    itemsz = matmul_dtype.itemsize
    vmem_limit = _vmem_limit_bytes()

    wqkv, bqkv, wagg, bagg, w1, b1, w2, b2 = _prepare_params(params, E, matmul_dtype)

    # Small problems: a single fused VMEM-resident kernel beats 3 pipelined calls.
    if fused is None:
        weight_bytes = itemsz * (E * 3 * HD + HD * E + E * E2 + E2 * E)
        act_bytes = 4 * S * (4 * E + 6 * HD + H * S)
        fused = (2 * (weight_bytes + act_bytes) < 4 * 1024 * 1024) and S <= 512

    if fused:
        def const_f(shape):
            return pl.BlockSpec(shape, lambda b: (0,) * len(shape))

        flops = (2 * B * S * (E * 3 * HD + HD * E + E * E2 + E2 * E)
                 + 4 * B * H * S * S * D)
        out = pl.pallas_call(
            functools.partial(fused_small_kernel, num_heads=H, head_dim=D,
                              recip_approx=recip_approx),
            out_shape=jax.ShapeDtypeStruct((B, S, E), x.dtype),
            grid=(B,),
            in_specs=[pl.BlockSpec((1, S, E), lambda b: (b, 0, 0)),
                      const_f(wqkv.shape), const_f(bqkv.shape),
                      const_f(wagg.shape), const_f(bagg.shape),
                      const_f(w1.shape), const_f(b1.shape),
                      const_f(w2.shape), const_f(b2.shape)],
            out_specs=pl.BlockSpec((1, S, E), lambda b: (b, 0, 0)),
            compiler_params=pltpu.CompilerParams(
                dimension_semantics=("parallel",), vmem_limit_bytes=vmem_limit),
            cost_estimate=pl.CostEstimate(flops=flops,
                                          transcendentals=B * S * (H * S + E2),
                                          bytes_accessed=4 * 2 * B * S * E),
        )(x, wqkv, bqkv, wagg, bagg, w1, b1, w2, b2)
        return out

    # ---------------- pipelined 3-kernel path (production sizes) ----------------------
    Tr = _pick_tile(rows, row_tile)
    Tq = _pick_tile(S, q_tile)
    Tk = _pick_tile(S, k_tile)

    x2d = x.reshape(rows, E)

    row_E = pl.BlockSpec((Tr, E), lambda r: (r, 0))
    row_HD = pl.BlockSpec((Tr, HD), lambda r: (r, 0))

    def const(shape):
        # TODO(synk): on v7x (64 MiB VMEM) these grid-constant weight blocks should be
        # single-buffered (pipeline_mode=pl.Buffered(1)) / contraction-tiled for huge E.
        return pl.BlockSpec(shape, lambda r: (0,) * len(shape))

    # ---- 1) LayerNorm + fused QKV projection (one wide MXU matmul) --------------------
    proj_flops = 2 * rows * E * 3 * HD
    proj_bytes = 4 * rows * E + itemsz * (E * 3 * HD + 3 * rows * HD)
    q2d, k2d, v2d = pl.pallas_call(
        functools.partial(qkv_proj_kernel, all_head_dim=HD),
        out_shape=[jax.ShapeDtypeStruct((rows, HD), matmul_dtype)] * 3,
        grid=(rows // Tr,),
        in_specs=[row_E, const(wqkv.shape), const(bqkv.shape)],
        out_specs=[row_HD] * 3,
        compiler_params=pltpu.CompilerParams(
            dimension_semantics=("parallel",), vmem_limit_bytes=vmem_limit),
        cost_estimate=pl.CostEstimate(flops=proj_flops, transcendentals=0,
                                      bytes_accessed=proj_bytes),
    )(x2d, wqkv, bqkv)

    # Free leading-dim reshapes only — no XLA transposes / extra HBM round trips.
    q3 = q2d.reshape(B, S, HD)
    k3 = k2d.reshape(B, S, HD)
    v3 = v2d.reshape(B, S, HD)

    # ---- 2) Flash attention: heads split in VMEM, lane-dense (Tq, H*D) output ---------
    q_spec = pl.BlockSpec((1, Tq, HD), lambda b, qi, ki: (b, qi, 0))
    kv_spec = pl.BlockSpec((1, Tk, HD), lambda b, qi, ki: (b, ki, 0))
    att_flops = 4 * B * H * S * S * D
    att_bytes = itemsz * 4 * B * S * HD
    att3 = pl.pallas_call(
        functools.partial(flash_attn_kernel, seq_len=S, num_heads=H, head_dim=D,
                          matmul_dtype=matmul_dtype, recip_approx=recip_approx),
        out_shape=jax.ShapeDtypeStruct((B, S, HD), matmul_dtype),
        grid=(B, S // Tq, S // Tk),
        in_specs=[q_spec, kv_spec, kv_spec],
        out_specs=pl.BlockSpec((1, Tq, HD), lambda b, qi, ki: (b, qi, 0)),
        scratch_shapes=[pltpu.VMEM((H, Tq, 1), jnp.float32),
                        pltpu.VMEM((H, Tq, 1), jnp.float32),
                        pltpu.VMEM((H, Tq, D), jnp.float32)],
        compiler_params=pltpu.CompilerParams(
            dimension_semantics=("parallel", "parallel", "arbitrary"),
            vmem_limit_bytes=vmem_limit),
        cost_estimate=pl.CostEstimate(flops=att_flops, transcendentals=B * H * S * S,
                                      bytes_accessed=att_bytes),
    )(q3, k3, v3)

    att2d = att3.reshape(rows, HD)                      # free reshape

    # ---- 3) Head aggregation + residual + MLP -----------------------------------------
    mlp_flops = 2 * rows * (HD * E + E * E2 + E2 * E)
    mlp_bytes = itemsz * (rows * HD + HD * E + E * E2 + E2 * E) + 4 * rows * 2 * E
    out2d = pl.pallas_call(
        agg_mlp_kernel,
        out_shape=jax.ShapeDtypeStruct((rows, E), x.dtype),
        grid=(rows // Tr,),
        in_specs=[row_HD, row_E,
                  const(wagg.shape), const(bagg.shape),
                  const(w1.shape), const(b1.shape),
                  const(w2.shape), const(b2.shape)],
        out_specs=row_E,
        compiler_params=pltpu.CompilerParams(
            dimension_semantics=("parallel",), vmem_limit_bytes=vmem_limit),
        cost_estimate=pl.CostEstimate(flops=mlp_flops, transcendentals=rows * E2,
                                      bytes_accessed=mlp_bytes),
    )(att2d, x2d, wagg, bagg, w1, b1, w2, b2)

    return out2d.reshape(B, S, E)


# --------------------------------------------------------------------------------------
# Pure-JAX reference (mirrors the PyTorch forward with an empty kv-cache)
# --------------------------------------------------------------------------------------
def reference_jax(x, params, *, num_heads, head_dim):
    (lnq_g, lnq_b, wq, bq, lnk_g, lnk_b, wk, bk, lnv_g, lnv_b, wv, bv,
     wagg, bagg, lnm_g, lnm_b, w1, b1, w2, b2) = params
    B, S, E = x.shape

    def ln(z, g, b):
        mu = jnp.mean(z, -1, keepdims=True)
        var = jnp.mean((z - mu) ** 2, -1, keepdims=True)
        return (z - mu) / jnp.sqrt(var + _LN_EPS) * g[0] + b[0]

    q = (ln(x, lnq_g, lnq_b) @ wq + bq[0]).reshape(B, S, num_heads, head_dim).transpose(0, 2, 1, 3)
    k = (ln(x, lnk_g, lnk_b) @ wk + bk[0]).reshape(B, S, num_heads, head_dim).transpose(0, 2, 1, 3)
    v = (ln(x, lnv_g, lnv_b) @ wv + bv[0]).reshape(B, S, num_heads, head_dim).transpose(0, 2, 1, 3)
    scores = jnp.einsum('bhqd,bhkd->bhqk', q, k) / math.sqrt(E)
    row = jnp.arange(S)[:, None]
    col = jnp.arange(S)[None, :]
    mask = jnp.where(col - row >= S - 1, -999.0, 0.0)
    p = jax.nn.softmax(scores + mask, axis=-1)
    att = jnp.einsum('bhqk,bhkd->bhqd', p, v).transpose(0, 2, 1, 3).reshape(B, S, -1)
    attended = att @ wagg + bagg[0] + x
    h1 = ln(attended, lnm_g, lnm_b) @ w1 + b1[0]
    h1 = jax.nn.gelu(h1, approximate=True)
    return h1 @ w2 + b2[0] + attended


def init_params(key, E, num_heads, head_dim):
    HD = num_heads * head_dim
    ks = jax.random.split(key, 20)
    scale = 0.02

    def w(k, shape):
        return (scale * jax.random.normal(k, shape)).astype(jnp.float32)

    def ln(kg, kb, dim):
        g = (1.0 + 0.1 * jax.random.normal(kg, (1, dim))).astype(jnp.float32)
        b = (0.1 * jax.random.normal(kb, (1, dim))).astype(jnp.float32)
        return g, b

    lnq_g, lnq_b = ln(ks[0], ks[1], E)
    lnk_g, lnk_b = ln(ks[2], ks[3], E)
    lnv_g, lnv_b = ln(ks[4], ks[5], E)
    lnm_g, lnm_b = ln(ks[6], ks[7], E)
    return [
        lnq_g, lnq_b, w(ks[8], (E, HD)), w(ks[9], (1, HD)),        # ln_q + q linear
        lnk_g, lnk_b, w(ks[10], (E, HD)), w(ks[11], (1, HD)),      # ln_k + k linear
        lnv_g, lnv_b, w(ks[12], (E, HD)), w(ks[13], (1, HD)),      # ln_v + v linear
        w(ks[14], (HD, E)), w(ks[15], (1, E)),                     # head_aggregator
        lnm_g, lnm_b, w(ks[16], (E, 2 * E)), w(ks[17], (1, 2 * E)),  # mlp LN + fc1
        w(ks[18], (2 * E, E)), w(ks[19], (1, E)),                  # mlp fc2
    ]


if __name__ == "__main__":
    B, S, E = 2, 8, 32
    num_heads, head_dim = 4, 8

    key = jax.random.PRNGKey(0)
    k_x, k_p = jax.random.split(key)
    x = jax.random.normal(k_x, (B, S, E), dtype=jnp.float32)
    params = init_params(k_p, E, num_heads, head_dim)

    ref = np.asarray(jax.block_until_ready(
        reference_jax(x, params, num_heads=num_heads, head_dim=head_dim)))

    # Exercise both the fused single-kernel path and the 3-kernel pipelined path,
    # each in f32 (tight check) and bf16 (mixed precision, looser check).
    for fused in (True, False):
        fwd_f32 = jax.jit(functools.partial(
            multihead_causal_attention, num_heads=num_heads, head_dim=head_dim,
            matmul_dtype=jnp.float32, fused=fused))
        out_f32 = np.asarray(jax.block_until_ready(fwd_f32(x, params)))
        assert out_f32.shape == (B, S, E)
        np.testing.assert_allclose(out_f32, ref, atol=1e-3, rtol=1e-3)

        fwd_bf16 = jax.jit(functools.partial(
            multihead_causal_attention, num_heads=num_heads, head_dim=head_dim,
            matmul_dtype=jnp.bfloat16, fused=fused))
        out_bf16 = np.asarray(jax.block_until_ready(fwd_bf16(x, params)))
        np.testing.assert_allclose(out_bf16, ref, atol=8e-2, rtol=8e-2)

    print("KERNEL_OK")
</pallas_src>

<mosaic_0001>
module attributes {stable_mosaic.version = 11 : i64} {
  func.func @fused_small_kernel(%arg0: i32, %arg1: memref<1x8x32xf32, #tpu.memory_space<vmem>>, %arg2: memref<32x96xf32, #tpu.memory_space<vmem>>, %arg3: memref<1x96xf32, #tpu.memory_space<vmem>>, %arg4: memref<32x32xf32, #tpu.memory_space<vmem>>, %arg5: memref<1x32xf32, #tpu.memory_space<vmem>>, %arg6: memref<32x64xf32, #tpu.memory_space<vmem>>, %arg7: memref<1x64xf32, #tpu.memory_space<vmem>>, %arg8: memref<64x32xf32, #tpu.memory_space<vmem>>, %arg9: memref<1x32xf32, #tpu.memory_space<vmem>>, %arg10: memref<1x8x32xf32, #tpu.memory_space<vmem>>) attributes {dimension_semantics = [#tpu.dimension_semantics<parallel>], iteration_bounds = array<i64: 2>, scalar_prefetch = 0 : i64, scratch_operands = 0 : i64, tpu.core_type = #tpu.core_type<tc>, window_params = [{transform_indices = @transform_0, window_bounds = array<i64: 1, 8, 32>}, {pipeline_mode = #tpu.pipeline_mode<synchronous>, transform_indices = @transform_1, window_bounds = array<i64: 32, 96>}, {pipeline_mode = #tpu.pipeline_mode<synchronous>, transform_indices = @transform_2, window_bounds = array<i64: 1, 96>}, {pipeline_mode = #tpu.pipeline_mode<synchronous>, transform_indices = @transform_3, window_bounds = array<i64: 32, 32>}, {pipeline_mode = #tpu.pipeline_mode<synchronous>, transform_indices = @transform_4, window_bounds = array<i64: 1, 32>}, {pipeline_mode = #tpu.pipeline_mode<synchronous>, transform_indices = @transform_5, window_bounds = array<i64: 32, 64>}, {pipeline_mode = #tpu.pipeline_mode<synchronous>, transform_indices = @transform_6, window_bounds = array<i64: 1, 64>}, {pipeline_mode = #tpu.pipeline_mode<synchronous>, transform_indices = @transform_7, window_bounds = array<i64: 64, 32>}, {pipeline_mode = #tpu.pipeline_mode<synchronous>, transform_indices = @transform_8, window_bounds = array<i64: 1, 32>}, {transform_indices = @transform_9, window_bounds = array<i64: 1, 8, 32>}]} {
    %c0 = arith.constant 0 : index
    %c0_0 = arith.constant 0 : index
    %c0_1 = arith.constant 0 : index
    %0 = vector.load %arg1[%c0, %c0_0, %c0_1] : memref<1x8x32xf32, #tpu.memory_space<vmem>>, vector<1x8x32xf32>
    %1 = vector.shape_cast %0 : vector<1x8x32xf32> to vector<8x32xf32>
    %cst = arith.constant dense<0.000000e+00> : vector<8xf32>
    %2 = vector.multi_reduction <add>, %1, %cst [1] : vector<8x32xf32> to vector<8xf32>
    %3 = vector.shape_cast %2 : vector<8xf32> to vector<8x1xf32>
    %cst_2 = arith.constant 3.200000e+01 : f32
    %4 = vector.broadcast %cst_2 : f32 to vector<8x1xf32>
    %5 = arith.divf %3, %4 : vector<8x1xf32>
    %6 = vector.broadcast %5 : vector<8x1xf32> to vector<8x32xf32>
    %7 = arith.subf %1, %6 : vector<8x32xf32>
    %8 = arith.mulf %7, %7 : vector<8x32xf32>
    %cst_3 = arith.constant dense<0.000000e+00> : vector<8xf32>
    %9 = vector.multi_reduction <add>, %8, %cst_3 [1] : vector<8x32xf32> to vector<8xf32>
    %10 = vector.shape_cast %9 : vector<8xf32> to vector<8x1xf32>
    %cst_4 = arith.constant 3.200000e+01 : f32
    %11 = vector.broadcast %cst_4 : f32 to vector<8x1xf32>
    %12 = arith.divf %10, %11 : vector<8x1xf32>
    %13 = vector.broadcast %5 : vector<8x1xf32> to vector<8x32xf32>
    %14 = arith.subf %1, %13 : vector<8x32xf32>
    %cst_5 = arith.constant 9.99999974E-6 : f32
    %15 = vector.broadcast %cst_5 : f32 to vector<8x1xf32>
    %16 = arith.addf %12, %15 : vector<8x1xf32>
    %17 = math.rsqrt %16 : vector<8x1xf32>
    %18 = vector.broadcast %17 : vector<8x1xf32> to vector<8x32xf32>
    %19 = arith.mulf %14, %18 : vector<8x32xf32>
    %c0_6 = arith.constant 0 : index
    %c0_7 = arith.constant 0 : index
    %20 = vector.load %arg2[%c0_6, %c0_7] : memref<32x96xf32, #tpu.memory_space<vmem>>, vector<32x96xf32>
    %cst_8 = arith.constant dense<0.000000e+00> : vector<8x96xf32>
    %21 = tpu.matmul %19, %20, %cst_8 {dimension_numbers = #tpu.dot_dimension_numbers<[1], [0], [0], [1], [0, 0, 1, 1], [], []>} : vector<8x32xf32>, vector<32x96xf32>, vector<8x96xf32> -> vector<8x96xf32>
    %c0_9 = arith.constant 0 : index
    %c0_10 = arith.constant 0 : index
    %22 = vector.load %arg3[%c0_9, %c0_10] : memref<1x96xf32, #tpu.memory_space<vmem>>, vector<1x96xf32>
    %23 = vector.shape_cast %22 : vector<1x96xf32> to vector<96xf32>
    %24 = vector.shape_cast %23 : vector<96xf32> to vector<1x96xf32>
    %25 = vector.broadcast %24 : vector<1x96xf32> to vector<8x96xf32>
    %26 = arith.addf %21, %25 : vector<8x96xf32>
    %27 = vector.extract_strided_slice %26 {offsets = [0, 0], sizes = [8, 32], strides = [1, 1]} : vector<8x96xf32> to vector<8x32xf32>
    %28 = vector.extract_strided_slice %27 {offsets = [0, 0], sizes = [8, 8], strides = [1, 1]} : vector<8x32xf32> to vector<8x8xf32>
    %29 = vector.extract_strided_slice %27 {offsets = [0, 8], sizes = [8, 8], strides = [1, 1]} : vector<8x32xf32> to vector<8x8xf32>
    %30 = vector.extract_strided_slice %27 {offsets = [0, 16], sizes = [8, 8], strides = [1, 1]} : vector<8x32xf32> to vector<8x8xf32>
    %31 = vector.extract_strided_slice %27 {offsets = [0, 24], sizes = [8, 8], strides = [1, 1]} : vector<8x32xf32> to vector<8x8xf32>
    %32 = vector.shape_cast %28 : vector<8x8xf32> to vector<1x8x8xf32>
    %33 = vector.shape_cast %29 : vector<8x8xf32> to vector<1x8x8xf32>
    %34 = vector.shape_cast %30 : vector<8x8xf32> to vector<1x8x8xf32>
    %35 = vector.shape_cast %31 : vector<8x8xf32> to vector<1x8x8xf32>
    %36 = tpu.concatenate %32, %33, %34, %35 in 0 : vector<1x8x8xf32>, vector<1x8x8xf32>, vector<1x8x8xf32>, vector<1x8x8xf32> -> vector<4x8x8xf32>
    %37 = vector.extract_strided_slice %26 {offsets = [0, 32], sizes = [8, 32], strides = [1, 1]} : vector<8x96xf32> to vector<8x32xf32>
    %38 = vector.extract_strided_slice %37 {offsets = [0, 0], sizes = [8, 8], strides = [1, 1]} : vector<8x32xf32> to vector<8x8xf32>
    %39 = vector.extract_strided_slice %37 {offsets = [0, 8], sizes = [8, 8], strides = [1, 1]} : vector<8x32xf32> to vector<8x8xf32>
    %40 = vector.extract_strided_slice %37 {offsets = [0, 16], sizes = [8, 8], strides = [1, 1]} : vector<8x32xf32> to vector<8x8xf32>
    %41 = vector.extract_strided_slice %37 {offsets = [0, 24], sizes = [8, 8], strides = [1, 1]} : vector<8x32xf32> to vector<8x8xf32>
    %42 = vector.shape_cast %38 : vector<8x8xf32> to vector<1x8x8xf32>
    %43 = vector.shape_cast %39 : vector<8x8xf32> to vector<1x8x8xf32>
    %44 = vector.shape_cast %40 : vector<8x8xf32> to vector<1x8x8xf32>
    %45 = vector.shape_cast %41 : vector<8x8xf32> to vector<1x8x8xf32>
    %46 = tpu.concatenate %42, %43, %44, %45 in 0 : vector<1x8x8xf32>, vector<1x8x8xf32>, vector<1x8x8xf32>, vector<1x8x8xf32> -> vector<4x8x8xf32>
    %47 = vector.extract_strided_slice %26 {offsets = [0, 64], sizes = [8, 32], strides = [1, 1]} : vector<8x96xf32> to vector<8x32xf32>
    %48 = vector.extract_strided_slice %47 {offsets = [0, 0], sizes = [8, 8], strides = [1, 1]} : vector<8x32xf32> to vector<8x8xf32>
    %49 = vector.extract_strided_slice %47 {offsets = [0, 8], sizes = [8, 8], strides = [1, 1]} : vector<8x32xf32> to vector<8x8xf32>
    %50 = vector.extract_strided_slice %47 {offsets = [0, 16], sizes = [8, 8], strides = [1, 1]} : vector<8x32xf32> to vector<8x8xf32>
    %51 = vector.extract_strided_slice %47 {offsets = [0, 24], sizes = [8, 8], strides = [1, 1]} : vector<8x32xf32> to vector<8x8xf32>
    %52 = vector.shape_cast %48 : vector<8x8xf32> to vector<1x8x8xf32>
    %53 = vector.shape_cast %49 : vector<8x8xf32> to vector<1x8x8xf32>
    %54 = vector.shape_cast %50 : vector<8x8xf32> to vector<1x8x8xf32>
    %55 = vector.shape_cast %51 : vector<8x8xf32> to vector<1x8x8xf32>
    %56 = tpu.concatenate %52, %53, %54, %55 in 0 : vector<1x8x8xf32>, vector<1x8x8xf32>, vector<1x8x8xf32>, vector<1x8x8xf32> -> vector<4x8x8xf32>
    "tpu.trace_start"() <{level = 10 : i32, message = "hqd,hkd->hqk"}> : () -> ()
    %cst_11 = arith.constant dense<0.000000e+00> : vector<4x8x8xf32>
    %57 = tpu.matmul %36, %46, %cst_11 {dimension_numbers = #tpu.dot_dimension_numbers<[2], [2], [1], [1], [0, 0, 0, 1, 1, 1], [0], [0]>} : vector<4x8x8xf32>, vector<4x8x8xf32>, vector<4x8x8xf32> -> vector<4x8x8xf32>
    "tpu.trace_stop"() : () -> ()
    %58 = tpu.iota {dimensions = array<i32: 0>} : vector<8x8xi32>
    %59 = tpu.iota {dimensions = array<i32: 1>} : vector<8x8xi32>
    %60 = arith.subi %59, %58 : vector<8x8xi32>
    %c7_i32 = arith.constant 7 : i32
    %61 = vector.broadcast %c7_i32 : i32 to vector<8x8xi32>
    %62 = arith.cmpi sge, %60, %61 : vector<8x8xi32>
    %63 = vector.shape_cast %62 : vector<8x8xi1> to vector<1x8x8xi1>
    %cst_12 = arith.constant 9.990000e+02 : f32
    %64 = vector.broadcast %cst_12 : f32 to vector<4x8x8xf32>
    %65 = arith.subf %57, %64 : vector<4x8x8xf32>
    %66 = vector.shape_cast %63 : vector<1x8x8xi1> to vector<1x8x8xi1>
    %67 = vector.broadcast %66 : vector<1x8x8xi1> to vector<4x8x8xi1>
    %68 = arith.select %67, %65, %57 : vector<4x8x8xi1>, vector<4x8x8xf32>
    %cst_13 = arith.constant dense<0xFF800000> : vector<4x8xf32>
    %69 = vector.multi_reduction <maximumf>, %68, %cst_13 [2] : vector<4x8x8xf32> to vector<4x8xf32>
    %70 = vector.shape_cast %69 : vector<4x8xf32> to vector<4x8x1xf32>
    %71 = vector.broadcast %70 : vector<4x8x1xf32> to vector<4x8x8xf32>
    %72 = arith.subf %68, %71 : vector<4x8x8xf32>
    %73 = math.exp %72 : vector<4x8x8xf32>
    %cst_14 = arith.constant dense<0.000000e+00> : vector<4x8xf32>
    %74 = vector.multi_reduction <add>, %73, %cst_14 [2] : vector<4x8x8xf32> to vector<4x8xf32>
    %75 = vector.shape_cast %74 : vector<4x8xf32> to vector<4x8x1xf32>
    "tpu.trace_start"() <{level = 10 : i32, message = "hqk,hkd->hqd"}> : () -> ()
    %cst_15 = arith.constant dense<0.000000e+00> : vector<4x8x8xf32>
    %76 = tpu.matmul %73, %56, %cst_15 {dimension_numbers = #tpu.dot_dimension_numbers<[2], [1], [1], [2], [0, 0, 0, 1, 1, 2], [0], [0]>} : vector<4x8x8xf32>, vector<4x8x8xf32>, vector<4x8x8xf32> -> vector<4x8x8xf32>
    "tpu.trace_stop"() : () -> ()
    %77 = tpu.reciprocal %75 : vector<4x8x1xf32> -> vector<4x8x1xf32>
    %78 = vector.broadcast %77 : vector<4x8x1xf32> to vector<4x8x8xf32>
    %79 = arith.mulf %76, %78 : vector<4x8x8xf32>
    %c0_16 = arith.constant 0 : index
    %c0_17 = arith.constant 0 : index
    %80 = vector.load %arg4[%c0_16, %c0_17] : memref<32x32xf32, #tpu.memory_space<vmem>>, vector<32x32xf32>
    %c0_18 = arith.constant 0 : index
    %c0_19 = arith.constant 0 : index
    %81 = vector.load %arg5[%c0_18, %c0_19] : memref<1x32xf32, #tpu.memory_space<vmem>>, vector<1x32xf32>
    %82 = vector.shape_cast %81 : vector<1x32xf32> to vector<32xf32>
    %83 = vector.shape_cast %82 : vector<32xf32> to vector<1x32xf32>
    %84 = vector.broadcast %83 : vector<1x32xf32> to vector<8x32xf32>
    %85 = arith.addf %84, %1 : vector<8x32xf32>
    %86 = vector.extract_strided_slice %79 {offsets = [0, 0, 0], sizes = [1, 8, 8], strides = [1, 1, 1]} : vector<4x8x8xf32> to vector<1x8x8xf32>
    %87 = vector.shape_cast %86 : vector<1x8x8xf32> to vector<8x8xf32>
    %88 = vector.extract_strided_slice %80 {offsets = [0, 0], sizes = [8, 32], strides = [1, 1]} : vector<32x32xf32> to vector<8x32xf32>
    %cst_20 = arith.constant dense<0.000000e+00> : vector<8x32xf32>
    %89 = tpu.matmul %87, %88, %cst_20 {dimension_numbers = #tpu.dot_dimension_numbers<[1], [0], [0], [1], [0, 0, 1, 1], [], []>} : vector<8x8xf32>, vector<8x32xf32>, vector<8x32xf32> -> vector<8x32xf32>
    %90 = arith.addf %85, %89 : vector<8x32xf32>
    %91 = vector.extract_strided_slice %79 {offsets = [1, 0, 0], sizes = [1, 8, 8], strides = [1, 1, 1]} : vector<4x8x8xf32> to vector<1x8x8xf32>
    %92 = vector.shape_cast %91 : vector<1x8x8xf32> to vector<8x8xf32>
    %93 = vector.extract_strided_slice %80 {offsets = [8, 0], sizes = [8, 32], strides = [1, 1]} : vector<32x32xf32> to vector<8x32xf32>
    %cst_21 = arith.constant dense<0.000000e+00> : vector<8x32xf32>
    %94 = tpu.matmul %92, %93, %cst_21 {dimension_numbers = #tpu.dot_dimension_numbers<[1], [0], [0], [1], [0, 0, 1, 1], [], []>} : vector<8x8xf32>, vector<8x32xf32>, vector<8x32xf32> -> vector<8x32xf32>
    %95 = arith.addf %90, %94 : vector<8x32xf32>
    %96 = vector.extract_strided_slice %79 {offsets = [2, 0, 0], sizes = [1, 8, 8], strides = [1, 1, 1]} : vector<4x8x8xf32> to vector<1x8x8xf32>
    %97 = vector.shape_cast %96 : vector<1x8x8xf32> to vector<8x8xf32>
    %98 = vector.extract_strided_slice %80 {offsets = [16, 0], sizes = [8, 32], strides = [1, 1]} : vector<32x32xf32> to vector<8x32xf32>
    %cst_22 = arith.constant dense<0.000000e+00> : vector<8x32xf32>
    %99 = tpu.matmul %97, %98, %cst_22 {dimension_numbers = #tpu.dot_dimension_numbers<[1], [0], [0], [1], [0, 0, 1, 1], [], []>} : vector<8x8xf32>, vector<8x32xf32>, vector<8x32xf32> -> vector<8x32xf32>
    %100 = arith.addf %95, %99 : vector<8x32xf32>
    %101 = vector.extract_strided_slice %79 {offsets = [3, 0, 0], sizes = [1, 8, 8], strides = [1, 1, 1]} : vector<4x8x8xf32> to vector<1x8x8xf32>
    %102 = vector.shape_cast %101 : vector<1x8x8xf32> to vector<8x8xf32>
    %103 = vector.extract_strided_slice %80 {offsets = [24, 0], sizes = [8, 32], strides = [1, 1]} : vector<32x32xf32> to vector<8x32xf32>
    %cst_23 = arith.constant dense<0.000000e+00> : vector<8x32xf32>
    %104 = tpu.matmul %102, %103, %cst_23 {dimension_numbers = #tpu.dot_dimension_numbers<[1], [0], [0], [1], [0, 0, 1, 1], [], []>} : vector<8x8xf32>, vector<8x32xf32>, vector<8x32xf32> -> vector<8x32xf32>
    %105 = arith.addf %100, %104 : vector<8x32xf32>
    %cst_24 = arith.constant dense<0.000000e+00> : vector<8xf32>
    %106 = vector.multi_reduction <add>, %105, %cst_24 [1] : vector<8x32xf32> to vector<8xf32>
    %107 = vector.shape_cast %106 : vector<8xf32> to vector<8x1xf32>
    %cst_25 = arith.constant 3.200000e+01 : f32
    %108 = vector.broadcast %cst_25 : f32 to vector<8x1xf32>
    %109 = arith.divf %107, %108 : vector<8x1xf32>
    %110 = vector.broadcast %109 : vector<8x1xf32> to vector<8x32xf32>
    %111 = arith.subf %105, %110 : vector<8x32xf32>
    %112 = arith.mulf %111, %111 : vector<8x32xf32>
    %cst_26 = arith.constant dense<0.000000e+00> : vector<8xf32>
    %113 = vector.multi_reduction <add>, %112, %cst_26 [1] : vector<8x32xf32> to vector<8xf32>
    %114 = vector.shape_cast %113 : vector<8xf32> to vector<8x1xf32>
    %cst_27 = arith.constant 3.200000e+01 : f32
    %115 = vector.broadcast %cst_27 : f32 to vector<8x1xf32>
    %116 = arith.divf %114, %115 : vector<8x1xf32>
    %117 = vector.broadcast %109 : vector<8x1xf32> to vector<8x32xf32>
    %118 = arith.subf %105, %117 : vector<8x32xf32>
    %cst_28 = arith.constant 9.99999974E-6 : f32
    %119 = vector.broadcast %cst_28 : f32 to vector<8x1xf32>
    %120 = arith.addf %116, %119 : vector<8x1xf32>
    %121 = math.rsqrt %120 : vector<8x1xf32>
    %122 = vector.broadcast %121 : vector<8x1xf32> to vector<8x32xf32>
    %123 = arith.mulf %118, %122 : vector<8x32xf32>
    %c0_29 = arith.constant 0 : index
    %c0_30 = arith.constant 0 : index
    %124 = vector.load %arg6[%c0_29, %c0_30] : memref<32x64xf32, #tpu.memory_space<vmem>>, vector<32x64xf32>
    %cst_31 = arith.constant dense<0.000000e+00> : vector<8x64xf32>
    %125 = tpu.matmul %123, %124, %cst_31 {dimension_numbers = #tpu.dot_dimension_numbers<[1], [0], [0], [1], [0, 0, 1, 1], [], []>} : vector<8x32xf32>, vector<32x64xf32>, vector<8x64xf32> -> vector<8x64xf32>
    %c0_32 = arith.constant 0 : index
    %c0_33 = arith.constant 0 : index
    %126 = vector.load %arg7[%c0_32, %c0_33] : memref<1x64xf32, #tpu.memory_space<vmem>>, vector<1x64xf32>
    %127 = vector.shape_cast %126 : vector<1x64xf32> to vector<64xf32>
    %128 = vector.shape_cast %127 : vector<64xf32> to vector<1x64xf32>
    %129 = vector.broadcast %128 : vector<1x64xf32> to vector<8x64xf32>
    %130 = arith.addf %125, %129 : vector<8x64xf32>
    %131 = arith.mulf %130, %130 : vector<8x64xf32>
    %132 = arith.mulf %130, %131 : vector<8x64xf32>
    %cst_34 = arith.constant 4.471500e-02 : f32
    %133 = vector.broadcast %cst_34 : f32 to vector<8x64xf32>
    %134 = arith.mulf %133, %132 : vector<8x64xf32>
    %135 = arith.addf %130, %134 : vector<8x64xf32>
    %cst_35 = arith.constant 0.797884583 : f32
    %136 = vector.broadcast %cst_35 : f32 to vector<8x64xf32>
    %137 = arith.mulf %136, %135 : vector<8x64xf32>
    %138 = math.tanh %137 : vector<8x64xf32>
    %cst_36 = arith.constant 1.000000e+00 : f32
    %139 = vector.broadcast %cst_36 : f32 to vector<8x64xf32>
    %140 = arith.addf %139, %138 : vector<8x64xf32>
    %cst_37 = arith.constant 5.000000e-01 : f32
    %141 = vector.broadcast %cst_37 : f32 to vector<8x64xf32>
    %142 = arith.mulf %141, %140 : vector<8x64xf32>
    %143 = arith.mulf %130, %142 : vector<8x64xf32>
    %c0_38 = arith.constant 0 : index
    %c0_39 = arith.constant 0 : index
    %144 = vector.load %arg8[%c0_38, %c0_39] : memref<64x32xf32, #tpu.memory_space<vmem>>, vector<64x32xf32>
    %cst_40 = arith.constant dense<0.000000e+00> : vector<8x32xf32>
    %145 = tpu.matmul %143, %144, %cst_40 {dimension_numbers = #tpu.dot_dimension_numbers<[1], [0], [0], [1], [0, 0, 1, 1], [], []>} : vector<8x64xf32>, vector<64x32xf32>, vector<8x32xf32> -> vector<8x32xf32>
    %c0_41 = arith.constant 0 : index
    %c0_42 = arith.constant 0 : index
    %146 = vector.load %arg9[%c0_41, %c0_42] : memref<1x32xf32, #tpu.memory_space<vmem>>, vector<1x32xf32>
    %147 = vector.shape_cast %146 : vector<1x32xf32> to vector<32xf32>
    %148 = vector.shape_cast %147 : vector<32xf32> to vector<1x32xf32>
    %149 = vector.broadcast %148 : vector<1x32xf32> to vector<8x32xf32>
    %150 = arith.addf %145, %149 : vector<8x32xf32>
    %151 = arith.addf %150, %105 : vector<8x32xf32>
    %c0_43 = arith.constant 0 : index
    %c0_44 = arith.constant 0 : index
    %c0_45 = arith.constant 0 : index
    %152 = vector.load %arg10[%c0_43, %c0_44, %c0_45] : memref<1x8x32xf32, #tpu.memory_space<vmem>>, vector<1x8x32xf32>
    %153 = vector.shape_cast %152 : vector<1x8x32xf32> to vector<8x32xf32>
    %154 = vector.shape_cast %151 : vector<8x32xf32> to vector<1x8x32xf32>
    tpu.vector_store %arg10[%c0_43, %c0_44, %c0_45], %154 {strides = array<i32>} : memref<1x8x32xf32, #tpu.memory_space<vmem>>, vector<1x8x32xf32>,
    return
  }
  func.func @transform_0(%arg0: i32) -> (i32, i32, i32) {
    %c0_i32 = arith.constant 0 : i32
    %c0_i32_0 = arith.constant 0 : i32
    %c0_i32_1 = arith.constant 0 : i32
    return %arg0, %c0_i32, %c0_i32_0 : i32, i32, i32
  }
  func.func @transform_1(%arg0: i32) -> (i32, i32) {
    %c0_i32 = arith.constant 0 : i32
    %c0_i32_0 = arith.constant 0 : i32
    %c0_i32_1 = arith.constant 0 : i32
    return %c0_i32, %c0_i32_0 : i32, i32
  }
  func.func @transform_2(%arg0: i32) -> (i32, i32) {
    %c0_i32 = arith.constant 0 : i32
    %c0_i32_0 = arith.constant 0 : i32
    %c0_i32_1 = arith.constant 0 : i32
    return %c0_i32, %c0_i32_0 : i32, i32
  }
  func.func @transform_3(%arg0: i32) -> (i32, i32) {
    %c0_i32 = arith.constant 0 : i32
    %c0_i32_0 = arith.constant 0 : i32
    %c0_i32_1 = arith.constant 0 : i32
    return %c0_i32, %c0_i32_0 : i32, i32
  }
  func.func @transform_4(%arg0: i32) -> (i32, i32) {
    %c0_i32 = arith.constant 0 : i32
    %c0_i32_0 = arith.constant 0 : i32
    %c0_i32_1 = arith.constant 0 : i32
    return %c0_i32, %c0_i32_0 : i32, i32
  }
  func.func @transform_5(%arg0: i32) -> (i32, i32) {
    %c0_i32 = arith.constant 0 : i32
    %c0_i32_0 = arith.constant 0 : i32
    %c0_i32_1 = arith.constant 0 : i32
    return %c0_i32, %c0_i32_0 : i32, i32
  }
  func.func @transform_6(%arg0: i32) -> (i32, i32) {
    %c0_i32 = arith.constant 0 : i32
    %c0_i32_0 = arith.constant 0 : i32
    %c0_i32_1 = arith.constant 0 : i32
    return %c0_i32, %c0_i32_0 : i32, i32
  }
  func.func @transform_7(%arg0: i32) -> (i32, i32) {
    %c0_i32 = arith.constant 0 : i32
    %c0_i32_0 = arith.constant 0 : i32
    %c0_i32_1 = arith.constant 0 : i32
    return %c0_i32, %c0_i32_0 : i32, i32
  }
  func.func @transform_8(%arg0: i32) -> (i32, i32) {
    %c0_i32 = arith.constant 0 : i32
    %c0_i32_0 = arith.constant 0 : i32
    %c0_i32_1 = arith.constant 0 : i32
    return %c0_i32, %c0_i32_0 : i32, i32
  }
  func.func @transform_9(%arg0: i32) -> (i32, i32, i32) {
    %c0_i32 = arith.constant 0 : i32
    %c0_i32_0 = arith.constant 0 : i32
    %c0_i32_1 = arith.constant 0 : i32
    return %arg0, %c0_i32, %c0_i32_0 : i32, i32, i32
  }
}

</mosaic_0001>

<llo_original>
// kernel: multihead_causal_attention.1
$region0: #{multihead_causal_attention.1}
  #allocation0 [shape = 'u32[]', space=smem, size = 0x4, offset = 0x4, fixed_abs, tag = 'smem constant byte address 0x4 - core index']
  #allocation1 [shape = 'u32[144,128]{1,0:T(1,128)}', space=vmem, size = 0x12000, scoped, tag = 'internal scratch']
  %s0 = inlined_call_operand.vmem [shape: f32[2,8,32], index: 0, kind: input, shape index: {}]
  %s1 = inlined_call_operand.vmem [shape: f32[32,96], index: 1, kind: input, shape index: {}]
  %s2 = inlined_call_operand.vmem [shape: f32[1,96], index: 2, kind: input, shape index: {}]
  %s3 = inlined_call_operand.vmem [shape: f32[32,32], index: 3, kind: input, shape index: {}]
  %s4 = inlined_call_operand.vmem [shape: f32[1,32], index: 4, kind: input, shape index: {}]
  %s5 = inlined_call_operand.vmem [shape: f32[32,64], index: 5, kind: input, shape index: {}]
  %s6 = inlined_call_operand.vmem [shape: f32[1,64], index: 6, kind: input, shape index: {}]
  %s7 = inlined_call_operand.vmem [shape: f32[64,32], index: 7, kind: input, shape index: {}]
  %s8 = inlined_call_operand.vmem [shape: f32[1,32], index: 8, kind: input, shape index: {}]
  %s9 = inlined_call_operand.hbm [shape: f32[2,8,32], index: 9, kind: output, shape index: {}]
  %s10 = sld [smem:[#allocation0]]
  $region69: #{multihead_causal_attention.1} parent=0
    _
  %s12 = ssub.s32 1, %s10
  %s13 = scalar_select 0, %s12, %s10
  $region1: #{multihead_causal_attention.1} parent=0
    #allocation2 [shape = 'u8[8192]{0}', space=vmem, size = 0x2000, scoped, tag = 'output window, operand 0']
    #allocation3 [shape = 's32[2]{0}', space=sflag, size = 0x8, scoped, tag = 'scoped memory for multihead_causal_attention.1']
    %14 = vsyncpa [#allocation3], 0
    %s15 = scalar_lea.sflag [#allocation3], 1
    %16 = vsyncpa %s15, 0
    loop: start=0, step=1, limit=4
    $region2: #{multihead_causal_attention.1} parent=1 // loop_pre_header
      _
    $region3: #{multihead_causal_attention.1} parent=1 // loop_header
      %s18 = sphi 0, %s22
      %p19 = scmp.ge.s32.totalorder %s18, 4
      %s28 = sphi 0, %s30
      %s31 = sphi 0, %s28
      %s32 = sphi 0, %s31
      %s48 = sphi 0, %s32
      %s52 = sphi 0, %s52
      %s54 = sphi 0, %s52
      %s55 = sphi 0, %s54
      %s69 = sphi 0, %s55
      %s73 = sphi 0, %s73
      %s75 = sphi 0, %s73
      %s76 = sphi 0, %s75
      %s90 = sphi 0, %s76
      %s94 = sphi 0, %s94
      %s96 = sphi 0, %s94
      %s97 = sphi 0, %s96
      %s111 = sphi 0, %s97
      %s115 = sphi 0, %s115
      %s117 = sphi 0, %s115
      %s118 = sphi 0, %s117
      %s132 = sphi 0, %s118
      %s136 = sphi 0, %s136
      %s138 = sphi 0, %s136
      %s139 = sphi 0, %s138
      %s153 = sphi 0, %s139
      %s157 = sphi 0, %s157
      %s159 = sphi 0, %s157
      %s160 = sphi 0, %s159
      %s174 = sphi 0, %s160
      %s178 = sphi 0, %s178
      %s180 = sphi 0, %s178
      %s181 = sphi 0, %s180
      %s195 = sphi 0, %s181
      %s199 = sphi 0, %s199
      %s201 = sphi 0, %s199
      %s202 = sphi 0, %s201
      %s216 = sphi 0, %s202
      %s222 = sphi 0, %s224
      %s225 = sphi 0, %s222
      %s226 = sphi 0, %s225
      %s242 = sphi 0, %s226
    $region4: #{multihead_causal_attention.1} parent=1 // loop_header_branch
      %21 = sbr.rel (%p19) target = $region8
    $region5: #{multihead_causal_attention.1} parent=1 // loop_body
      %s23 = ssub.s32 %s18, 1
      %s24 = ssub.s32 %s18, 2
      %s25 = sadd.s32 %s18, 1
      %s26 = ssub.s32 %s18, %s25
      %p27 = scmp.eq.s32.totalorder %s26, 0
      %s29 = sadd.s32 %s28, 1
      %s30 = scalar_select %p27, %s28, %s29
      %p33 = pneg %p27
      %p34 = scmp.eq.s32.totalorder %s18, 1
      %p35 = por %p33, %p34
      %p36 = scmp.ne.s32.totalorder %s28, %s31
      %p37 = scmp.eq.s32.totalorder %s18, 0
      %p38 = por %p36, %p37
      %p39 = scmp.ne.s32.totalorder %s28, %s31
      %p40 = scmp.eq.s32.totalorder %s23, 1
      %p41 = por %p39, %p40
      %p42 = scmp.ne.s32.totalorder %s31, %s32
      %p43 = scmp.eq.s32.totalorder %s23, 0
      %p44 = por %p42, %p43
      %p45 = scmp.ne.s32.totalorder %s31, %s32
      %p46 = scmp.eq.s32.totalorder %s24, 1
      %p47 = por %p45, %p46
      %p49 = scmp.ne.s32.totalorder %s32, %s48
      %p50 = scmp.eq.s32.totalorder %s24, 0
      %p51 = por %p49, %p50
      %s53 = sadd.s32 %s52, 1
      %p56 = scmp.eq.s32.totalorder %s18, 1
      %p57 = scmp.ne.s32.totalorder %s52, %s54
      %p58 = scmp.eq.s32.totalorder %s18, 0
      %p59 = por %p57, %p58
      %p60 = scmp.ne.s32.totalorder %s52, %s54
      %p61 = scmp.eq.s32.totalorder %s23, 1
      %p62 = por %p60, %p61
      %p63 = scmp.ne.s32.totalorder %s54, %s55
      %p64 = scmp.eq.s32.totalorder %s23, 0
      %p65 = por %p63, %p64
      %p66 = scmp.ne.s32.totalorder %s54, %s55
      %p67 = scmp.eq.s32.totalorder %s24, 1
      %p68 = por %p66, %p67
      %p70 = scmp.ne.s32.totalorder %s55, %s69
      %p71 = scmp.eq.s32.totalorder %s24, 0
      %p72 = por %p70, %p71
      %s74 = sadd.s32 %s73, 1
      %p77 = scmp.eq.s32.totalorder %s18, 1
      %p78 = scmp.ne.s32.totalorder %s73, %s75
      %p79 = scmp.eq.s32.totalorder %s18, 0
      %p80 = por %p78, %p79
      %p81 = scmp.ne.s32.totalorder %s73, %s75
      %p82 = scmp.eq.s32.totalorder %s23, 1
      %p83 = por %p81, %p82
      %p84 = scmp.ne.s32.totalorder %s75, %s76
      %p85 = scmp.eq.s32.totalorder %s23, 0
      %p86 = por %p84, %p85
      %p87 = scmp.ne.s32.totalorder %s75, %s76
      %p88 = scmp.eq.s32.totalorder %s24, 1
      %p89 = por %p87, %p88
      %p91 = scmp.ne.s32.totalorder %s76, %s90
      %p92 = scmp.eq.s32.totalorder %s24, 0
      %p93 = por %p91, %p92
      %s95 = sadd.s32 %s94, 1
      %p98 = scmp.eq.s32.totalorder %s18, 1
      %p99 = scmp.ne.s32.totalorder %s94, %s96
      %p100 = scmp.eq.s32.totalorder %s18, 0
      %p101 = por %p99, %p100
      %p102 = scmp.ne.s32.totalorder %s94, %s96
      %p103 = scmp.eq.s32.totalorder %s23, 1
      %p104 = por %p102, %p103
      %p105 = scmp.ne.s32.totalorder %s96, %s97
      %p106 = scmp.eq.s32.totalorder %s23, 0
      %p107 = por %p105, %p106
      %p108 = scmp.ne.s32.totalorder %s96, %s97
      %p109 = scmp.eq.s32.totalorder %s24, 1
      %p110 = por %p108, %p109
      %p112 = scmp.ne.s32.totalorder %s97, %s111
      %p113 = scmp.eq.s32.totalorder %s24, 0
      %p114 = por %p112, %p113
      %s116 = sadd.s32 %s115, 1
      %p119 = scmp.eq.s32.totalorder %s18, 1
      %p120 = scmp.ne.s32.totalorder %s115, %s117
      %p121 = scmp.eq.s32.totalorder %s18, 0
      %p122 = por %p120, %p121
      %p123 = scmp.ne.s32.totalorder %s115, %s117
      %p124 = scmp.eq.s32.totalorder %s23, 1
      %p125 = por %p123, %p124
      %p126 = scmp.ne.s32.totalorder %s117, %s118
      %p127 = scmp.eq.s32.totalorder %s23, 0
      %p128 = por %p126, %p127
      %p129 = scmp.ne.s32.totalorder %s117, %s118
      %p130 = scmp.eq.s32.totalorder %s24, 1
      %p131 = por %p129, %p130
      %p133 = scmp.ne.s32.totalorder %s118, %s132
      %p134 = scmp.eq.s32.totalorder %s24, 0
      %p135 = por %p133, %p134
      %s137 = sadd.s32 %s136, 1
      %p140 = scmp.eq.s32.totalorder %s18, 1
      %p141 = scmp.ne.s32.totalorder %s136, %s138
      %p142 = scmp.eq.s32.totalorder %s18, 0
      %p143 = por %p141, %p142
      %p144 = scmp.ne.s32.totalorder %s136, %s138
      %p145 = scmp.eq.s32.totalorder %s23, 1
      %p146 = por %p144, %p145
      %p147 = scmp.ne.s32.totalorder %s138, %s139
      %p148 = scmp.eq.s32.totalorder %s23, 0
      %p149 = por %p147, %p148
      %p150 = scmp.ne.s32.totalorder %s138, %s139
      %p151 = scmp.eq.s32.totalorder %s24, 1
      %p152 = por %p150, %p151
      %p154 = scmp.ne.s32.totalorder %s139, %s153
      %p155 = scmp.eq.s32.totalorder %s24, 0
      %p156 = por %p154, %p155
      %s158 = sadd.s32 %s157, 1
      %p161 = scmp.eq.s32.totalorder %s18, 1
      %p162 = scmp.ne.s32.totalorder %s157, %s159
      %p163 = scmp.eq.s32.totalorder %s18, 0
      %p164 = por %p162, %p163
      %p165 = scmp.ne.s32.totalorder %s157, %s159
      %p166 = scmp.eq.s32.totalorder %s23, 1
      %p167 = por %p165, %p166
      %p168 = scmp.ne.s32.totalorder %s159, %s160
      %p169 = scmp.eq.s32.totalorder %s23, 0
      %p170 = por %p168, %p169
      %p171 = scmp.ne.s32.totalorder %s159, %s160
      %p172 = scmp.eq.s32.totalorder %s24, 1
      %p173 = por %p171, %p172
      %p175 = scmp.ne.s32.totalorder %s160, %s174
      %p176 = scmp.eq.s32.totalorder %s24, 0
      %p177 = por %p175, %p176
      %s179 = sadd.s32 %s178, 1
      %p182 = scmp.eq.s32.totalorder %s18, 1
      %p183 = scmp.ne.s32.totalorder %s178, %s180
      %p184 = scmp.eq.s32.totalorder %s18, 0
      %p185 = por %p183, %p184
      %p186 = scmp.ne.s32.totalorder %s178, %s180
      %p187 = scmp.eq.s32.totalorder %s23, 1
      %p188 = por %p186, %p187
      %p189 = scmp.ne.s32.totalorder %s180, %s181
      %p190 = scmp.eq.s32.totalorder %s23, 0
      %p191 = por %p189, %p190
      %p192 = scmp.ne.s32.totalorder %s180, %s181
      %p193 = scmp.eq.s32.totalorder %s24, 1
      %p194 = por %p192, %p193
      %p196 = scmp.ne.s32.totalorder %s181, %s195
      %p197 = scmp.eq.s32.totalorder %s24, 0
      %p198 = por %p196, %p197
      %s200 = sadd.s32 %s199, 1
      %p203 = scmp.eq.s32.totalorder %s18, 1
      %p204 = scmp.ne.s32.totalorder %s199, %s201
      %p205 = scmp.eq.s32.totalorder %s18, 0
      %p206 = por %p204, %p205
      %p207 = scmp.ne.s32.totalorder %s199, %s201
      %p208 = scmp.eq.s32.totalorder %s23, 1
      %p209 = por %p207, %p208
      %p210 = scmp.ne.s32.totalorder %s201, %s202
      %p211 = scmp.eq.s32.totalorder %s23, 0
      %p212 = por %p210, %p211
      %p213 = scmp.ne.s32.totalorder %s201, %s202
      %p214 = scmp.eq.s32.totalorder %s24, 1
      %p215 = por %p213, %p214
      %p217 = scmp.ne.s32.totalorder %s202, %s216
      %p218 = scmp.eq.s32.totalorder %s24, 0
      %p219 = por %p217, %p218
      %s220 = ssub.s32 %s18, %s25
      %p221 = scmp.eq.s32.totalorder %s220, 0
      %s223 = sadd.s32 %s222, 1
      %s224 = scalar_select %p221, %s222, %s223
      %p227 = pneg %p221
      %p228 = scmp.eq.s32.totalorder %s18, 1
      %p229 = por %p227, %p228
      %p230 = scmp.ne.s32.totalorder %s222, %s225
      %p231 = scmp.eq.s32.totalorder %s18, 0
      %p232 = por %p230, %p231
      %p233 = scmp.ne.s32.totalorder %s222, %s225
      %p234 = scmp.eq.s32.totalorder %s23, 1
      %p235 = por %p233, %p234
      %p236 = scmp.ne.s32.totalorder %s225, %s226
      %p237 = scmp.eq.s32.totalorder %s23, 0
      %p238 = por %p236, %p237
      %p239 = scmp.ne.s32.totalorder %s225, %s226
      %p240 = scmp.eq.s32.totalorder %s24, 1
      %p241 = por %p239, %p240
      %p243 = scmp.ne.s32.totalorder %s226, %s242
      %p244 = scmp.eq.s32.totalorder %s24, 0
      %p245 = por %p243, %p244
      %p246 = scmp.le.s32.totalorder 1, %s18
      %p247 = scmp.lt.s32.totalorder %s18, 3
      %p248 = pnand %p246, %p247
      %p249 = pneg %p248
      // Predicated region
      $region9: #{multihead_causal_attention.1} parent=5 // pred_check
        _
      $region10: #{multihead_causal_attention.1} parent=5 // pred_check_branch
        %251 = sbr.rel (%p248) target = $region12
      $region11: #{multihead_causal_attention.1} parent=5 // pred_region
        %s252 = ssub.s32 %s18, 1
        // Predicated region
        $region13: #{multihead_causal_attention.1} parent=11 // pred_check
          %p253 = pneg %p65
        $region14: #{multihead_causal_attention.1} parent=11 // pred_check_branch
          %255 = sbr.rel (%p253) target = $region16
        $region15: #{multihead_causal_attention.1} parent=11 // pred_region
          _
        $region16: #{multihead_causal_attention.1} parent=11 // pred_fallthru
          _
        // Predicated region
        $region17: #{multihead_causal_attention.1} parent=11 // pred_check
          %p256 = pneg %p86
        $region18: #{multihead_causal_attention.1} parent=11 // pred_check_branch
          %258 = sbr.rel (%p256) target = $region20
        $region19: #{multihead_causal_attention.1} parent=11 // pred_region
          _
        $region20: #{multihead_causal_attention.1} parent=11 // pred_fallthru
          _
        // Predicated region
        $region21: #{multihead_causal_attention.1} parent=11 // pred_check
          %p259 = pneg %p107
        $region22: #{multihead_causal_attention.1} parent=11 // pred_check_branch
          %261 = sbr.rel (%p259) target = $region24
        $region23: #{multihead_causal_attention.1} parent=11 // pred_region
          _
        $region24: #{multihead_causal_attention.1} parent=11 // pred_fallthru
          _
        // Predicated region
        $region25: #{multihead_causal_attention.1} parent=11 // pred_check
          %p262 = pneg %p128
        $region26: #{multihead_causal_attention.1} parent=11 // pred_check_branch
          %264 = sbr.rel (%p262) target = $region28
        $region27: #{multihead_causal_attention.1} parent=11 // pred_region
          _
        $region28: #{multihead_causal_attention.1} parent=11 // pred_fallthru
          _
        // Predicated region
        $region29: #{multihead_causal_attention.1} parent=11 // pred_check
          %p265 = pneg %p149
        $region30: #{multihead_causal_attention.1} parent=11 // pred_check_branch
          %267 = sbr.rel (%p265) target = $region32
        $region31: #{multihead_causal_attention.1} parent=11 // pred_region
          _
        $region32: #{multihead_causal_attention.1} parent=11 // pred_fallthru
          _
        // Predicated region
        $region33: #{multihead_causal_attention.1} parent=11 // pred_check
          %p268 = pneg %p170
        $region34: #{multihead_causal_attention.1} parent=11 // pred_check_branch
          %270 = sbr.rel (%p268) target = $region36
        $region35: #{multihead_causal_attention.1} parent=11 // pred_region
          _
        $region36: #{multihead_causal_attention.1} parent=11 // pred_fallthru
          _
        // Predicated region
        $region37: #{multihead_causal_attention.1} parent=11 // pred_check
          %p271 = pneg %p191
        $region38: #{multihead_causal_attention.1} parent=11 // pred_check_branch
          %273 = sbr.rel (%p271) target = $region40
        $region39: #{multihead_causal_attention.1} parent=11 // pred_region
          _
        $region40: #{multihead_causal_attention.1} parent=11 // pred_fallthru
          _
        // Predicated region
        $region41: #{multihead_causal_attention.1} parent=11 // pred_check
          %p274 = pneg %p212
        $region42: #{multihead_causal_attention.1} parent=11 // pred_check_branch
          %276 = sbr.rel (%p274) target = $region44
        $region43: #{multihead_causal_attention.1} parent=11 // pred_region
          _
        $region44: #{multihead_causal_attention.1} parent=11 // pred_fallthru
          _
      $region12: #{multihead_causal_attention.1} parent=5 // pred_fallthru
        _
      %p277 = scmp.lt.s32.totalorder %s18, 2
      // Predicated region
      $region45: #{multihead_causal_attention.1} parent=5 // pred_check
        %p278 = pneg %p277
      $region46: #{multihead_causal_attention.1} parent=5 // pred_check_branch
        %280 = sbr.rel (%p278) target = $region48
      $region47: #{multihead_causal_attention.1} parent=5 // pred_region
        // Predicated region
        $region49: #{multihead_causal_attention.1} parent=47 // pred_check
          %p281 = pneg %p38
        $region50: #{multihead_causal_attention.1} parent=47 // pred_check_branch
          %283 = sbr.rel (%p281) target = $region52
        $region51: #{multihead_causal_attention.1} parent=47 // pred_region
          %p284 = scmp.lt.s32.totalorder %s18, 1
          %s285 = scalar_select %p284, %s18, 1
          %s286 = smul.addr %s285, 8
          %s287 = scalar_lea.vmem %s0, %s286
        $region52: #{multihead_causal_attention.1} parent=47 // pred_fallthru
          _
      $region48: #{multihead_causal_attention.1} parent=5 // pred_fallthru
        _
      %p288 = scmp.le.s32.totalorder 1, %s18
      %p289 = scmp.lt.s32.totalorder %s18, 3
      %p290 = pnand %p288, %p289
      %p291 = pneg %p290
      // Predicated region
      $region53: #{multihead_causal_attention.1} parent=5 // pred_check
        _
      $region54: #{multihead_causal_attention.1} parent=5 // pred_check_branch
        %293 = sbr.rel (%p290) target = $region56
      $region55: #{multihead_causal_attention.1} parent=5 // pred_region
        %s294 = ssub.s32 %s18, 1
        %p295 = scmp.lt.s32.totalorder %s23, 1
        %s296 = scalar_select %p295, %s23, 1
        %s297 = smul.addr %s296, 8
        %s298 = scalar_lea.vmem %s0, %s297
        %p299 = pneg %p44
        %p300 = pneg %p41
        %p301 = pneg %p65
        %p302 = pneg %p62
        %p303 = pneg %p86
        %p304 = pneg %p83
        %p305 = pneg %p107
        %p306 = pneg %p104
        %p307 = pneg %p128
        %p308 = pneg %p125
        %p309 = pneg %p149
        %p310 = pneg %p146
        %p311 = pneg %p170
        %p312 = pneg %p167
        %p313 = pneg %p191
        %p314 = pneg %p188
        %p315 = pneg %p212
        %p316 = pneg %p209
        %p317 = pneg %p238
        %p318 = pneg %p235
        %s319 = sand.u32 %s225, 1
        %s320 = scalar_lea.sflag [#allocation3], %s319
        %s321 = sand.u32 %s225, 1
        %s322 = smul.addr %s321, 8
        %s323 = scalar_lea.vmem [#allocation2], %s322
        %p324 = scmp.lt.s32.totalorder %s23, 1
        %s325 = scalar_select %p324, %s23, 1
        %s326 = smul.addr %s325, 8
        %s327 = scalar_lea.vmem %s0, %s326
        %v328 = vld [vmem:[%s327] sm:$0xff]
        %vm329 = vcmask 261120
        %v330 = vsel %vm329, %v328, 0.0
        %331 = vadd.xlane.f32.xlu0 %v330
        %v332 = vpop.xlane.xlu0 %331
        %v333 = vrcp.pop 32.0
        %v334 = vmul.f32 %v332, %v333
        %v335 = vsub.f32 %v328, %v334
        %v336 = vmul.f32 %v335, %v335
        %v337 = vsel %vm329, %v336, 0.0
        %338 = vadd.xlane.f32.xlu0 %v337
        %v339 = vpop.xlane.xlu0 %338
        %v340 = vmul.f32 %v339, %v333
        %v341 = vadd.f32 %v340, 1e-05
        %v342 = vrsqrt.pop %v341
        %v343 = vmul.f32 %v335, %v342
        %v344 = vld [vmem:[%s1] sm:$0xff]
        %v345 = vld [vmem:[%s1 + $0x8] sm:$0xff]
        %v346 = vld [vmem:[%s1 + $0x10] sm:$0xff]
        %v347 = vld [vmem:[%s1 + $0x18] sm:$0xff]
        %v348 = vld [vmem:[%s2] sm:$0x1]
        %v350 = vlaneseq
        %v351 = vshrl.u32 %v350, 7
        %v352 = vsub.s32 0, %v351
        %v353 = vrot.slane %v348, %v352
        %v356 = vsel %vm329, %v343, 0
        %358 = vmatprep.subr.mxu0 0.0
        %359 = vmatpush1.msra.mxu0 0.0
        %360 = vmatprep.subr.mxu0 0.0
        %361 = vmatpush1.msra.mxu0 0.0
        %362 = vmatprep.subr.mxu0 0.0
        %363 = vmatpush1.msra.mxu0 0.0
        %364 = vmatprep.subr.mxu0 0.0
        %365 = vmatpush1.msra.mxu0 0.0
        %366 = vmatprep.subr.mxu0 0.0
        %367 = vmatpush1.msra.mxu0 0.0
        %368 = vmatprep.subr.mxu0 0.0
        %369 = vmatpush1.msra.mxu0 0.0
        %370 = vmatprep.subr.mxu0 0.0
        %371 = vmatpush1.msra.mxu0 0.0
        %372 = vmatprep.subr.mxu0 0.0
        %373 = vmatpush1.msra.mxu0 0.0
        %374 = vmatprep.subr.mxu0 0.0
        %375 = vmatpush1.msra.mxu0 0.0
        %376 = vmatprep.subr.mxu0 0.0
        %377 = vmatpush1.msra.mxu0 0.0
        %378 = vmatprep.subr.mxu0 0.0
        %379 = vmatpush1.msra.mxu0 0.0
        %380 = vmatprep.subr.mxu0 0.0
        %381 = vmatpush1.msra.mxu0 0.0
        %382 = vmatprep.subr.mxu0 0.0
        %383 = vmatpush1.msra.mxu0 %v347
        %384 = vmatprep.subr.mxu0 0.0
        %385 = vmatpush1.msra.mxu0 %v346
        %386 = vmatprep.subr.mxu0 0.0
        %387 = vmatpush1.msra.mxu0 %v345
        %388 = vmatprep.subr.mxu0 0.0
        %389 = vmatpush1.msra.mxu0 %v344
        %390 = vmatprep.subr.mxu0 0.0
        %391 = vmatpush2.msra.mxu0 0.0
        %392 = vmatprep.subr.mxu0 0.0
        %393 = vmatpush2.msra.mxu0 0.0
        %394 = vmatprep.subr.mxu0 0.0
        %395 = vmatpush2.msra.mxu0 0.0
        %396 = vmatprep.subr.mxu0 0.0
        %397 = vmatpush2.msra.mxu0 0.0
        %398 = vmatprep.subr.mxu0 0.0
        %399 = vmatpush2.msra.mxu0 0.0
        %400 = vmatprep.subr.mxu0 0.0
        %401 = vmatpush2.msra.mxu0 0.0
        %402 = vmatprep.subr.mxu0 0.0
        %403 = vmatpush2.msra.mxu0 0.0
        %404 = vmatprep.subr.mxu0 0.0
        %405 = vmatpush2.msra.mxu0 0.0
        %406 = vmatprep.subr.mxu0 0.0
        %407 = vmatpush2.msra.mxu0 0.0
        %408 = vmatprep.subr.mxu0 0.0
        %409 = vmatpush2.msra.mxu0 0.0
        %410 = vmatprep.subr.mxu0 0.0
        %411 = vmatpush2.msra.mxu0 0.0
        %412 = vmatprep.subr.mxu0 0.0
        %413 = vmatpush2.msra.mxu0 0.0
        %414 = vmatprep.subr.mxu0 0.0
        %415 = vmatpush2.msra.mxu0 0.0
        %416 = vmatprep.subr.mxu0 0.0
        %417 = vmatpush2.msra.mxu0 0.0
        %418 = vmatprep.subr.mxu0 0.0
        %419 = vmatpush2.msra.mxu0 0.0
        %420 = vmatprep.subr.mxu0 0.0
        %421 = vmatpush2.msra.mxu0 0.0
        %422 = vmatprep.mubr.f32.mxu0 0.0
        %423 = vmatmul.mubr.f32.gmra.mxu0 %v356
        %v424 = vpop.f32.mrf.mxu0
        %v425 = vadd.f32 %v353, %v424
        %v426 = vpop.f32.mrf.mxu0
        %427 = vdwg.mxu0
        %429 = vrot.lane.b32.xlu0 %v425, 120
        %v430 = vpop.permute.xlu0 %429
        %431 = vrot.lane.b32.xlu0 %v425, 112
        %v432 = vpop.permute.xlu0 %431
        %433 = vrot.lane.b32.xlu0 %v425, 104
        %v434 = vpop.permute.xlu0 %433
        %435 = vrot.lane.b32.xlu0 %v425, 96
        %v436 = vpop.permute.xlu0 %435
        %vm437 = vcmask 64512
        %v438 = vsel %vm437, %v425, 0
        %v440 = vsel %vm437, %v436, 0
        %442 = vmatprep.subr.mxu0 0.0
        %443 = vmatpush1.xpose.msra.mxu0 0.0
        %444 = vmatprep.subr.mxu0 0.0
        %445 = vmatpush1.xpose.msra.mxu0 0.0
        %446 = vmatprep.subr.mxu0 0.0
        %447 = vmatpush1.xpose.msra.mxu0 0.0
        %448 = vmatprep.subr.mxu0 0.0
        %449 = vmatpush1.xpose.msra.mxu0 0.0
        %450 = vmatprep.subr.mxu0 0.0
        %451 = vmatpush1.xpose.msra.mxu0 0.0
        %452 = vmatprep.subr.mxu0 0.0
        %453 = vmatpush1.xpose.msra.mxu0 0.0
        %454 = vmatprep.subr.mxu0 0.0
        %455 = vmatpush1.xpose.msra.mxu0 0.0
        %456 = vmatprep.subr.mxu0 0.0
        %457 = vmatpush1.xpose.msra.mxu0 0.0
        %458 = vmatprep.subr.mxu0 0.0
        %459 = vmatpush1.xpose.msra.mxu0 0.0
        %460 = vmatprep.subr.mxu0 0.0
        %461 = vmatpush1.xpose.msra.mxu0 0.0
        %462 = vmatprep.subr.mxu0 0.0
        %463 = vmatpush1.xpose.msra.mxu0 0.0
        %464 = vmatprep.subr.mxu0 0.0
        %465 = vmatpush1.xpose.msra.mxu0 0.0
        %466 = vmatprep.subr.mxu0 0.0
        %467 = vmatpush1.xpose.msra.mxu0 0.0
        %468 = vmatprep.subr.mxu0 0.0
        %469 = vmatpush1.xpose.msra.mxu0 0.0
        %470 = vmatprep.subr.mxu0 0.0
        %471 = vmatpush1.xpose.msra.mxu0 0.0
        %472 = vmatprep.subr.mxu0 0.0
        %473 = vmatpush1.xpose.msra.mxu0 %v440
        %474 = vmatprep.subr.mxu0 0.0
        %475 = vmatpush2.xpose.msra.mxu0 0.0
        %476 = vmatprep.subr.mxu0 0.0
        %477 = vmatpush2.xpose.msra.mxu0 0.0
        %478 = vmatprep.subr.mxu0 0.0
        %479 = vmatpush2.xpose.msra.mxu0 0.0
        %480 = vmatprep.subr.mxu0 0.0
        %481 = vmatpush2.xpose.msra.mxu0 0.0
        %482 = vmatprep.subr.mxu0 0.0
        %483 = vmatpush2.xpose.msra.mxu0 0.0
        %484 = vmatprep.subr.mxu0 0.0
        %485 = vmatpush2.xpose.msra.mxu0 0.0
        %486 = vmatprep.subr.mxu0 0.0
        %487 = vmatpush2.xpose.msra.mxu0 0.0
        %488 = vmatprep.subr.mxu0 0.0
        %489 = vmatpush2.xpose.msra.mxu0 0.0
        %490 = vmatprep.subr.mxu0 0.0
        %491 = vmatpush2.xpose.msra.mxu0 0.0
        %492 = vmatprep.subr.mxu0 0.0
        %493 = vmatpush2.xpose.msra.mxu0 0.0
        %494 = vmatprep.subr.mxu0 0.0
        %495 = vmatpush2.xpose.msra.mxu0 0.0
        %496 = vmatprep.subr.mxu0 0.0
        %497 = vmatpush2.xpose.msra.mxu0 0.0
        %498 = vmatprep.subr.mxu0 0.0
        %499 = vmatpush2.xpose.msra.mxu0 0.0
        %500 = vmatprep.subr.mxu0 0.0
        %501 = vmatpush2.xpose.msra.mxu0 0.0
        %502 = vmatprep.subr.mxu0 0.0
        %503 = vmatpush2.xpose.msra.mxu0 0.0
        %504 = vmatprep.subr.mxu0 0.0
        %505 = vmatpush2.xpose.msra.mxu0 0.0
        %506 = vmatprep.mubr.f32.mxu0 0.0
        %507 = vmatmul.mubr.f32.gmra.mxu0 %v438
        %v508 = vpop.f32.mrf.mxu0
        %v509 = vadd.f32 0.0, %v508
        %v510 = vpop.f32.mrf.mxu0
        %511 = vdwg.mxu0
        %512 = vrot.lane.b32.xlu0 %v430, 96
        %v513 = vpop.permute.xlu0 %512
        %v514 = vsel %vm437, %v430, 0
        %v516 = vsel %vm437, %v513, 0
        %518 = vmatprep.subr.mxu0 0.0
        %519 = vmatpush1.xpose.msra.mxu0 0.0
        %520 = vmatprep.subr.mxu0 0.0
        %521 = vmatpush1.xpose.msra.mxu0 0.0
        %522 = vmatprep.subr.mxu0 0.0
        %523 = vmatpush1.xpose.msra.mxu0 0.0
        %524 = vmatprep.subr.mxu0 0.0
        %525 = vmatpush1.xpose.msra.mxu0 0.0
        %526 = vmatprep.subr.mxu0 0.0
        %527 = vmatpush1.xpose.msra.mxu0 0.0
        %528 = vmatprep.subr.mxu0 0.0
        %529 = vmatpush1.xpose.msra.mxu0 0.0
        %530 = vmatprep.subr.mxu0 0.0
        %531 = vmatpush1.xpose.msra.mxu0 0.0
        %532 = vmatprep.subr.mxu0 0.0
        %533 = vmatpush1.xpose.msra.mxu0 0.0
        %534 = vmatprep.subr.mxu0 0.0
        %535 = vmatpush1.xpose.msra.mxu0 0.0
        %536 = vmatprep.subr.mxu0 0.0
        %537 = vmatpush1.xpose.msra.mxu0 0.0
        %538 = vmatprep.subr.mxu0 0.0
        %539 = vmatpush1.xpose.msra.mxu0 0.0
        %540 = vmatprep.subr.mxu0 0.0
        %541 = vmatpush1.xpose.msra.mxu0 0.0
        %542 = vmatprep.subr.mxu0 0.0
        %543 = vmatpush1.xpose.msra.mxu0 0.0
        %544 = vmatprep.subr.mxu0 0.0
        %545 = vmatpush1.xpose.msra.mxu0 0.0
        %546 = vmatprep.subr.mxu0 0.0
        %547 = vmatpush1.xpose.msra.mxu0 0.0
        %548 = vmatprep.subr.mxu0 0.0
        %549 = vmatpush1.xpose.msra.mxu0 %v516
        %550 = vmatprep.subr.mxu0 0.0
        %551 = vmatpush2.xpose.msra.mxu0 0.0
        %552 = vmatprep.subr.mxu0 0.0
        %553 = vmatpush2.xpose.msra.mxu0 0.0
        %554 = vmatprep.subr.mxu0 0.0
        %555 = vmatpush2.xpose.msra.mxu0 0.0
        %556 = vmatprep.subr.mxu0 0.0
        %557 = vmatpush2.xpose.msra.mxu0 0.0
        %558 = vmatprep.subr.mxu0 0.0
        %559 = vmatpush2.xpose.msra.mxu0 0.0
        %560 = vmatprep.subr.mxu0 0.0
        %561 = vmatpush2.xpose.msra.mxu0 0.0
        %562 = vmatprep.subr.mxu0 0.0
        %563 = vmatpush2.xpose.msra.mxu0 0.0
        %564 = vmatprep.subr.mxu0 0.0
        %565 = vmatpush2.xpose.msra.mxu0 0.0
        %566 = vmatprep.subr.mxu0 0.0
        %567 = vmatpush2.xpose.msra.mxu0 0.0
        %568 = vmatprep.subr.mxu0 0.0
        %569 = vmatpush2.xpose.msra.mxu0 0.0
        %570 = vmatprep.subr.mxu0 0.0
        %571 = vmatpush2.xpose.msra.mxu0 0.0
        %572 = vmatprep.subr.mxu0 0.0
        %573 = vmatpush2.xpose.msra.mxu0 0.0
        %574 = vmatprep.subr.mxu0 0.0
        %575 = vmatpush2.xpose.msra.mxu0 0.0
        %576 = vmatprep.subr.mxu0 0.0
        %577 = vmatpush2.xpose.msra.mxu0 0.0
        %578 = vmatprep.subr.mxu0 0.0
        %579 = vmatpush2.xpose.msra.mxu0 0.0
        %580 = vmatprep.subr.mxu0 0.0
        %581 = vmatpush2.xpose.msra.mxu0 0.0
        %582 = vmatprep.mubr.f32.mxu0 0.0
        %583 = vmatmul.mubr.f32.gmra.mxu0 %v514
        %v584 = vpop.f32.mrf.mxu0
        %v585 = vadd.f32 0.0, %v584
        %v586 = vpop.f32.mrf.mxu0
        %587 = vdwg.mxu0
        %588 = vrot.lane.b32.xlu0 %v432, 96
        %v589 = vpop.permute.xlu0 %588
        %v590 = vsel %vm437, %v432, 0
        %v592 = vsel %vm437, %v589, 0
        %594 = vmatprep.subr.mxu0 0.0
        %595 = vmatpush1.xpose.msra.mxu0 0.0
        %596 = vmatprep.subr.mxu0 0.0
        %597 = vmatpush1.xpose.msra.mxu0 0.0
        %598 = vmatprep.subr.mxu0 0.0
        %599 = vmatpush1.xpose.msra.mxu0 0.0
        %600 = vmatprep.subr.mxu0 0.0
        %601 = vmatpush1.xpose.msra.mxu0 0.0
        %602 = vmatprep.subr.mxu0 0.0
        %603 = vmatpush1.xpose.msra.mxu0 0.0
        %604 = vmatprep.subr.mxu0 0.0
        %605 = vmatpush1.xpose.msra.mxu0 0.0
        %606 = vmatprep.subr.mxu0 0.0
        %607 = vmatpush1.xpose.msra.mxu0 0.0
        %608 = vmatprep.subr.mxu0 0.0
        %609 = vmatpush1.xpose.msra.mxu0 0.0
        %610 = vmatprep.subr.mxu0 0.0
        %611 = vmatpush1.xpose.msra.mxu0 0.0
        %612 = vmatprep.subr.mxu0 0.0
        %613 = vmatpush1.xpose.msra.mxu0 0.0
        %614 = vmatprep.subr.mxu0 0.0
        %615 = vmatpush1.xpose.msra.mxu0 0.0
        %616 = vmatprep.subr.mxu0 0.0
        %617 = vmatpush1.xpose.msra.mxu0 0.0
        %618 = vmatprep.subr.mxu0 0.0
        %619 = vmatpush1.xpose.msra.mxu0 0.0
        %620 = vmatprep.subr.mxu0 0.0
        %621 = vmatpush1.xpose.msra.mxu0 0.0
        %622 = vmatprep.subr.mxu0 0.0
        %623 = vmatpush1.xpose.msra.mxu0 0.0
        %624 = vmatprep.subr.mxu0 0.0
        %625 = vmatpush1.xpose.msra.mxu0 %v592
        %626 = vmatprep.subr.mxu0 0.0
        %627 = vmatpush2.xpose.msra.mxu0 0.0
        %628 = vmatprep.subr.mxu0 0.0
        %629 = vmatpush2.xpose.msra.mxu0 0.0
        %630 = vmatprep.subr.mxu0 0.0
        %631 = vmatpush2.xpose.msra.mxu0 0.0
        %632 = vmatprep.subr.mxu0 0.0
        %633 = vmatpush2.xpose.msra.mxu0 0.0
        %634 = vmatprep.subr.mxu0 0.0
        %635 = vmatpush2.xpose.msra.mxu0 0.0
        %636 = vmatprep.subr.mxu0 0.0
        %637 = vmatpush2.xpose.msra.mxu0 0.0
        %638 = vmatprep.subr.mxu0 0.0
        %639 = vmatpush2.xpose.msra.mxu0 0.0
        %640 = vmatprep.subr.mxu0 0.0
        %641 = vmatpush2.xpose.msra.mxu0 0.0
        %642 = vmatprep.subr.mxu0 0.0
        %643 = vmatpush2.xpose.msra.mxu0 0.0
        %644 = vmatprep.subr.mxu0 0.0
        %645 = vmatpush2.xpose.msra.mxu0 0.0
        %646 = vmatprep.subr.mxu0 0.0
        %647 = vmatpush2.xpose.msra.mxu0 0.0
        %648 = vmatprep.subr.mxu0 0.0
        %649 = vmatpush2.xpose.msra.mxu0 0.0
        %650 = vmatprep.subr.mxu0 0.0
        %651 = vmatpush2.xpose.msra.mxu0 0.0
        %652 = vmatprep.subr.mxu0 0.0
        %653 = vmatpush2.xpose.msra.mxu0 0.0
        %654 = vmatprep.subr.mxu0 0.0
        %655 = vmatpush2.xpose.msra.mxu0 0.0
        %656 = vmatprep.subr.mxu0 0.0
        %657 = vmatpush2.xpose.msra.mxu0 0.0
        %658 = vmatprep.mubr.f32.mxu0 0.0
        %659 = vmatmul.mubr.f32.gmra.mxu0 %v590
        %v660 = vpop.f32.mrf.mxu0
        %v661 = vadd.f32 0.0, %v660
        %v662 = vpop.f32.mrf.mxu0
        %663 = vdwg.mxu0
        %664 = vrot.lane.b32.xlu0 %v434, 96
        %v665 = vpop.permute.xlu0 %664
        %v666 = vsel %vm437, %v434, 0
        %v668 = vsel %vm437, %v665, 0
        %670 = vmatprep.subr.mxu0 0.0
        %671 = vmatpush1.xpose.msra.mxu0 0.0
        %672 = vmatprep.subr.mxu0 0.0
        %673 = vmatpush1.xpose.msra.mxu0 0.0
        %674 = vmatprep.subr.mxu0 0.0
        %675 = vmatpush1.xpose.msra.mxu0 0.0
        %676 = vmatprep.subr.mxu0 0.0
        %677 = vmatpush1.xpose.msra.mxu0 0.0
        %678 = vmatprep.subr.mxu0 0.0
        %679 = vmatpush1.xpose.msra.mxu0 0.0
        %680 = vmatprep.subr.mxu0 0.0
        %681 = vmatpush1.xpose.msra.mxu0 0.0
        %682 = vmatprep.subr.mxu0 0.0
        %683 = vmatpush1.xpose.msra.mxu0 0.0
        %684 = vmatprep.subr.mxu0 0.0
        %685 = vmatpush1.xpose.msra.mxu0 0.0
        %686 = vmatprep.subr.mxu0 0.0
        %687 = vmatpush1.xpose.msra.mxu0 0.0
        %688 = vmatprep.subr.mxu0 0.0
        %689 = vmatpush1.xpose.msra.mxu0 0.0
        %690 = vmatprep.subr.mxu0 0.0
        %691 = vmatpush1.xpose.msra.mxu0 0.0
        %692 = vmatprep.subr.mxu0 0.0
        %693 = vmatpush1.xpose.msra.mxu0 0.0
        %694 = vmatprep.subr.mxu0 0.0
        %695 = vmatpush1.xpose.msra.mxu0 0.0
        %696 = vmatprep.subr.mxu0 0.0
        %697 = vmatpush1.xpose.msra.mxu0 0.0
        %698 = vmatprep.subr.mxu0 0.0
        %699 = vmatpush1.xpose.msra.mxu0 0.0
        %700 = vmatprep.subr.mxu0 0.0
        %701 = vmatpush1.xpose.msra.mxu0 %v668
        %702 = vmatprep.subr.mxu0 0.0
        %703 = vmatpush2.xpose.msra.mxu0 0.0
        %704 = vmatprep.subr.mxu0 0.0
        %705 = vmatpush2.xpose.msra.mxu0 0.0
        %706 = vmatprep.subr.mxu0 0.0
        %707 = vmatpush2.xpose.msra.mxu0 0.0
        %708 = vmatprep.subr.mxu0 0.0
        %709 = vmatpush2.xpose.msra.mxu0 0.0
        %710 = vmatprep.subr.mxu0 0.0
        %711 = vmatpush2.xpose.msra.mxu0 0.0
        %712 = vmatprep.subr.mxu0 0.0
        %713 = vmatpush2.xpose.msra.mxu0 0.0
        %714 = vmatprep.subr.mxu0 0.0
        %715 = vmatpush2.xpose.msra.mxu0 0.0
        %716 = vmatprep.subr.mxu0 0.0
        %717 = vmatpush2.xpose.msra.mxu0 0.0
        %718 = vmatprep.subr.mxu0 0.0
        %719 = vmatpush2.xpose.msra.mxu0 0.0
        %720 = vmatprep.subr.mxu0 0.0
        %721 = vmatpush2.xpose.msra.mxu0 0.0
        %722 = vmatprep.subr.mxu0 0.0
        %723 = vmatpush2.xpose.msra.mxu0 0.0
        %724 = vmatprep.subr.mxu0 0.0
        %725 = vmatpush2.xpose.msra.mxu0 0.0
        %726 = vmatprep.subr.mxu0 0.0
        %727 = vmatpush2.xpose.msra.mxu0 0.0
        %728 = vmatprep.subr.mxu0 0.0
        %729 = vmatpush2.xpose.msra.mxu0 0.0
        %730 = vmatprep.subr.mxu0 0.0
        %731 = vmatpush2.xpose.msra.mxu0 0.0
        %732 = vmatprep.subr.mxu0 0.0
        %733 = vmatpush2.xpose.msra.mxu0 0.0
        %734 = vmatprep.mubr.f32.mxu0 0.0
        %735 = vmatmul.mubr.f32.gmra.mxu0 %v666
        %v736 = vpop.f32.mrf.mxu0
        %v737 = vadd.f32 0.0, %v736
        %v738 = vpop.f32.mrf.mxu0
        %739 = vdwg.mxu0
        %v740 = vlaneseq
        %v741 = vshrl.u32 %v740, 7
        %v742 = vlaneseq
        %v743 = vand.u32 %v742, 127
        %v744 = vsub.s32 %v743, %v741
        %vm745 = vcmp.ge.s32.totalorder %v744, 7
        %v746 = vsub.f32 %v509, 999.0
        %v747 = vsub.f32 %v585, 999.0
        %v748 = vsub.f32 %v661, 999.0
        %v749 = vsub.f32 %v737, 999.0
        %v750 = vsel %vm745, 1, 0
        %vm751 = vcmp.eq.s32.totalorder %v750, 1
        %v752 = vsel %vm751, %v746, %v509
        %v753 = vsel %vm751, %v747, %v585
        %v754 = vsel %vm751, %v748, %v661
        %v755 = vsel %vm751, %v749, %v737
        %v756 = vsel %vm437, %v752, -inf
        %757 = vmax.xlane.f32.xlu0 %v756
        %v758 = vpop.xlane.xlu0 %757
        %v759 = vsel %vm437, %v753, -inf
        %760 = vmax.xlane.f32.xlu0 %v759
        %v761 = vpop.xlane.xlu0 %760
        %v762 = vsel %vm437, %v754, -inf
        %763 = vmax.xlane.f32.xlu0 %v762
        %v764 = vpop.xlane.xlu0 %763
        %v765 = vsel %vm437, %v755, -inf
        %766 = vmax.xlane.f32.xlu0 %v765
        %v767 = vpop.xlane.xlu0 %766
        %v768 = vsub.f32 %v752, %v758
        %v769 = vsub.f32 %v753, %v761
        %v770 = vsub.f32 %v754, %v764
        %v771 = vsub.f32 %v755, %v767
        %v772 = vmul.f32 %v768, 1.442695
        %v773 = vpow.pop %v772
        %v774 = vmul.f32 %v769, 1.442695
        %v775 = vpow.pop %v774
        %v776 = vmul.f32 %v770, 1.442695
        %v777 = vpow.pop %v776
        %v778 = vmul.f32 %v771, 1.442695
        %v779 = vpow.pop %v778
        %v780 = vsel %vm437, %v773, 0.0
        %781 = vadd.xlane.f32.xlu0 %v780
        %v782 = vpop.xlane.xlu0 %781
        %v783 = vsel %vm437, %v775, 0.0
        %784 = vadd.xlane.f32.xlu0 %v783
        %v785 = vpop.xlane.xlu0 %784
        %v786 = vsel %vm437, %v777, 0.0
        %787 = vadd.xlane.f32.xlu0 %v786
        %v788 = vpop.xlane.xlu0 %787
        %v789 = vsel %vm437, %v779, 0.0
        %790 = vadd.xlane.f32.xlu0 %v789
        %v791 = vpop.xlane.xlu0 %790
        %792 = vrot.lane.b32.xlu0 %v425, 64
        %v793 = vpop.permute.xlu0 %792
        %v796 = vsel %vm437, %v773, 0
        %798 = vmatprep.subr.mxu0 0.0
        %799 = vmatpush1.msra.mxu0 0.0
        %800 = vmatprep.subr.mxu0 0.0
        %801 = vmatpush1.msra.mxu0 0.0
        %802 = vmatprep.subr.mxu0 0.0
        %803 = vmatpush1.msra.mxu0 0.0
        %804 = vmatprep.subr.mxu0 0.0
        %805 = vmatpush1.msra.mxu0 0.0
        %806 = vmatprep.subr.mxu0 0.0
        %807 = vmatpush1.msra.mxu0 0.0
        %808 = vmatprep.subr.mxu0 0.0
        %809 = vmatpush1.msra.mxu0 0.0
        %810 = vmatprep.subr.mxu0 0.0
        %811 = vmatpush1.msra.mxu0 0.0
        %812 = vmatprep.subr.mxu0 0.0
        %813 = vmatpush1.msra.mxu0 0.0
        %814 = vmatprep.subr.mxu0 0.0
        %815 = vmatpush1.msra.mxu0 0.0
        %816 = vmatprep.subr.mxu0 0.0
        %817 = vmatpush1.msra.mxu0 0.0
        %818 = vmatprep.subr.mxu0 0.0
        %819 = vmatpush1.msra.mxu0 0.0
        %820 = vmatprep.subr.mxu0 0.0
        %821 = vmatpush1.msra.mxu0 0.0
        %822 = vmatprep.subr.mxu0 0.0
        %823 = vmatpush1.msra.mxu0 0.0
        %824 = vmatprep.subr.mxu0 0.0
        %825 = vmatpush1.msra.mxu0 0.0
        %826 = vmatprep.subr.mxu0 0.0
        %827 = vmatpush1.msra.mxu0 0.0
        %828 = vmatprep.subr.mxu0 0.0
        %829 = vmatpush1.msra.mxu0 %v793
        %830 = vmatprep.subr.mxu0 0.0
        %831 = vmatpush2.msra.mxu0 0.0
        %832 = vmatprep.subr.mxu0 0.0
        %833 = vmatpush2.msra.mxu0 0.0
        %834 = vmatprep.subr.mxu0 0.0
        %835 = vmatpush2.msra.mxu0 0.0
        %836 = vmatprep.subr.mxu0 0.0
        %837 = vmatpush2.msra.mxu0 0.0
        %838 = vmatprep.subr.mxu0 0.0
        %839 = vmatpush2.msra.mxu0 0.0
        %840 = vmatprep.subr.mxu0 0.0
        %841 = vmatpush2.msra.mxu0 0.0
        %842 = vmatprep.subr.mxu0 0.0
        %843 = vmatpush2.msra.mxu0 0.0
        %844 = vmatprep.subr.mxu0 0.0
        %845 = vmatpush2.msra.mxu0 0.0
        %846 = vmatprep.subr.mxu0 0.0
        %847 = vmatpush2.msra.mxu0 0.0
        %848 = vmatprep.subr.mxu0 0.0
        %849 = vmatpush2.msra.mxu0 0.0
        %850 = vmatprep.subr.mxu0 0.0
        %851 = vmatpush2.msra.mxu0 0.0
        %852 = vmatprep.subr.mxu0 0.0
        %853 = vmatpush2.msra.mxu0 0.0
        %854 = vmatprep.subr.mxu0 0.0
        %855 = vmatpush2.msra.mxu0 0.0
        %856 = vmatprep.subr.mxu0 0.0
        %857 = vmatpush2.msra.mxu0 0.0
        %858 = vmatprep.subr.mxu0 0.0
        %859 = vmatpush2.msra.mxu0 0.0
        %860 = vmatprep.subr.mxu0 0.0
        %861 = vmatpush2.msra.mxu0 0.0
        %862 = vmatprep.mubr.f32.mxu0 0.0
        %863 = vmatmul.mubr.f32.gmra.mxu0 %v796
        %v864 = vpop.f32.mrf.mxu0
        %v865 = vadd.f32 0.0, %v864
        %v866 = vpop.f32.mrf.mxu0
        %867 = vdwg.mxu0
        %868 = vrot.lane.b32.xlu0 %v430, 64
        %v869 = vpop.permute.xlu0 %868
        %v872 = vsel %vm437, %v775, 0
        %874 = vmatprep.subr.mxu0 0.0
        %875 = vmatpush1.msra.mxu0 0.0
        %876 = vmatprep.subr.mxu0 0.0
        %877 = vmatpush1.msra.mxu0 0.0
        %878 = vmatprep.subr.mxu0 0.0
        %879 = vmatpush1.msra.mxu0 0.0
        %880 = vmatprep.subr.mxu0 0.0
        %881 = vmatpush1.msra.mxu0 0.0
        %882 = vmatprep.subr.mxu0 0.0
        %883 = vmatpush1.msra.mxu0 0.0
        %884 = vmatprep.subr.mxu0 0.0
        %885 = vmatpush1.msra.mxu0 0.0
        %886 = vmatprep.subr.mxu0 0.0
        %887 = vmatpush1.msra.mxu0 0.0
        %888 = vmatprep.subr.mxu0 0.0
        %889 = vmatpush1.msra.mxu0 0.0
        %890 = vmatprep.subr.mxu0 0.0
        %891 = vmatpush1.msra.mxu0 0.0
        %892 = vmatprep.subr.mxu0 0.0
        %893 = vmatpush1.msra.mxu0 0.0
        %894 = vmatprep.subr.mxu0 0.0
        %895 = vmatpush1.msra.mxu0 0.0
        %896 = vmatprep.subr.mxu0 0.0
        %897 = vmatpush1.msra.mxu0 0.0
        %898 = vmatprep.subr.mxu0 0.0
        %899 = vmatpush1.msra.mxu0 0.0
        %900 = vmatprep.subr.mxu0 0.0
        %901 = vmatpush1.msra.mxu0 0.0
        %902 = vmatprep.subr.mxu0 0.0
        %903 = vmatpush1.msra.mxu0 0.0
        %904 = vmatprep.subr.mxu0 0.0
        %905 = vmatpush1.msra.mxu0 %v869
        %906 = vmatprep.subr.mxu0 0.0
        %907 = vmatpush2.msra.mxu0 0.0
        %908 = vmatprep.subr.mxu0 0.0
        %909 = vmatpush2.msra.mxu0 0.0
        %910 = vmatprep.subr.mxu0 0.0
        %911 = vmatpush2.msra.mxu0 0.0
        %912 = vmatprep.subr.mxu0 0.0
        %913 = vmatpush2.msra.mxu0 0.0
        %914 = vmatprep.subr.mxu0 0.0
        %915 = vmatpush2.msra.mxu0 0.0
        %916 = vmatprep.subr.mxu0 0.0
        %917 = vmatpush2.msra.mxu0 0.0
        %918 = vmatprep.subr.mxu0 0.0
        %919 = vmatpush2.msra.mxu0 0.0
        %920 = vmatprep.subr.mxu0 0.0
        %921 = vmatpush2.msra.mxu0 0.0
        %922 = vmatprep.subr.mxu0 0.0
        %923 = vmatpush2.msra.mxu0 0.0
        %924 = vmatprep.subr.mxu0 0.0
        %925 = vmatpush2.msra.mxu0 0.0
        %926 = vmatprep.subr.mxu0 0.0
        %927 = vmatpush2.msra.mxu0 0.0
        %928 = vmatprep.subr.mxu0 0.0
        %929 = vmatpush2.msra.mxu0 0.0
        %930 = vmatprep.subr.mxu0 0.0
        %931 = vmatpush2.msra.mxu0 0.0
        %932 = vmatprep.subr.mxu0 0.0
        %933 = vmatpush2.msra.mxu0 0.0
        %934 = vmatprep.subr.mxu0 0.0
        %935 = vmatpush2.msra.mxu0 0.0
        %936 = vmatprep.subr.mxu0 0.0
        %937 = vmatpush2.msra.mxu0 0.0
        %938 = vmatprep.mubr.f32.mxu0 0.0
        %939 = vmatmul.mubr.f32.gmra.mxu0 %v872
        %v940 = vpop.f32.mrf.mxu0
        %v941 = vadd.f32 0.0, %v940
        %v942 = vpop.f32.mrf.mxu0
        %943 = vdwg.mxu0
        %944 = vrot.lane.b32.xlu0 %v432, 64
        %v945 = vpop.permute.xlu0 %944
        %v948 = vsel %vm437, %v777, 0
        %950 = vmatprep.subr.mxu0 0.0
        %951 = vmatpush1.msra.mxu0 0.0
        %952 = vmatprep.subr.mxu0 0.0
        %953 = vmatpush1.msra.mxu0 0.0
        %954 = vmatprep.subr.mxu0 0.0
        %955 = vmatpush1.msra.mxu0 0.0
        %956 = vmatprep.subr.mxu0 0.0
        %957 = vmatpush1.msra.mxu0 0.0
        %958 = vmatprep.subr.mxu0 0.0
        %959 = vmatpush1.msra.mxu0 0.0
        %960 = vmatprep.subr.mxu0 0.0
        %961 = vmatpush1.msra.mxu0 0.0
        %962 = vmatprep.subr.mxu0 0.0
        %963 = vmatpush1.msra.mxu0 0.0
        %964 = vmatprep.subr.mxu0 0.0
        %965 = vmatpush1.msra.mxu0 0.0
        %966 = vmatprep.subr.mxu0 0.0
        %967 = vmatpush1.msra.mxu0 0.0
        %968 = vmatprep.subr.mxu0 0.0
        %969 = vmatpush1.msra.mxu0 0.0
        %970 = vmatprep.subr.mxu0 0.0
        %971 = vmatpush1.msra.mxu0 0.0
        %972 = vmatprep.subr.mxu0 0.0
        %973 = vmatpush1.msra.mxu0 0.0
        %974 = vmatprep.subr.mxu0 0.0
        %975 = vmatpush1.msra.mxu0 0.0
        %976 = vmatprep.subr.mxu0 0.0
        %977 = vmatpush1.msra.mxu0 0.0
        %978 = vmatprep.subr.mxu0 0.0
        %979 = vmatpush1.msra.mxu0 0.0
        %980 = vmatprep.subr.mxu0 0.0
        %981 = vmatpush1.msra.mxu0 %v945
        %982 = vmatprep.subr.mxu0 0.0
        %983 = vmatpush2.msra.mxu0 0.0
        %984 = vmatprep.subr.mxu0 0.0
        %985 = vmatpush2.msra.mxu0 0.0
        %986 = vmatprep.subr.mxu0 0.0
        %987 = vmatpush2.msra.mxu0 0.0
        %988 = vmatprep.subr.mxu0 0.0
        %989 = vmatpush2.msra.mxu0 0.0
        %990 = vmatprep.subr.mxu0 0.0
        %991 = vmatpush2.msra.mxu0 0.0
        %992 = vmatprep.subr.mxu0 0.0
        %993 = vmatpush2.msra.mxu0 0.0
        %994 = vmatprep.subr.mxu0 0.0
        %995 = vmatpush2.msra.mxu0 0.0
        %996 = vmatprep.subr.mxu0 0.0
        %997 = vmatpush2.msra.mxu0 0.0
        %998 = vmatprep.subr.mxu0 0.0
        %999 = vmatpush2.msra.mxu0 0.0
        %1000 = vmatprep.subr.mxu0 0.0
        %1001 = vmatpush2.msra.mxu0 0.0
        %1002 = vmatprep.subr.mxu0 0.0
        %1003 = vmatpush2.msra.mxu0 0.0
        %1004 = vmatprep.subr.mxu0 0.0
        %1005 = vmatpush2.msra.mxu0 0.0
        %1006 = vmatprep.subr.mxu0 0.0
        %1007 = vmatpush2.msra.mxu0 0.0
        %1008 = vmatprep.subr.mxu0 0.0
        %1009 = vmatpush2.msra.mxu0 0.0
        %1010 = vmatprep.subr.mxu0 0.0
        %1011 = vmatpush2.msra.mxu0 0.0
        %1012 = vmatprep.subr.mxu0 0.0
        %1013 = vmatpush2.msra.mxu0 0.0
        %1014 = vmatprep.mubr.f32.mxu0 0.0
        %1015 = vmatmul.mubr.f32.gmra.mxu0 %v948
        %v1016 = vpop.f32.mrf.mxu0
        %v1017 = vadd.f32 0.0, %v1016
        %v1018 = vpop.f32.mrf.mxu0
        %1019 = vdwg.mxu0
        %1020 = vrot.lane.b32.xlu0 %v434, 64
        %v1021 = vpop.permute.xlu0 %1020
        %v1024 = vsel %vm437, %v779, 0
        %1026 = vmatprep.subr.mxu0 0.0
        %1027 = vmatpush1.msra.mxu0 0.0
        %1028 = vmatprep.subr.mxu0 0.0
        %1029 = vmatpush1.msra.mxu0 0.0
        %1030 = vmatprep.subr.mxu0 0.0
        %1031 = vmatpush1.msra.mxu0 0.0
        %1032 = vmatprep.subr.mxu0 0.0
        %1033 = vmatpush1.msra.mxu0 0.0
        %1034 = vmatprep.subr.mxu0 0.0
        %1035 = vmatpush1.msra.mxu0 0.0
        %1036 = vmatprep.subr.mxu0 0.0
        %1037 = vmatpush1.msra.mxu0 0.0
        %1038 = vmatprep.subr.mxu0 0.0
        %1039 = vmatpush1.msra.mxu0 0.0
        %1040 = vmatprep.subr.mxu0 0.0
        %1041 = vmatpush1.msra.mxu0 0.0
        %1042 = vmatprep.subr.mxu0 0.0
        %1043 = vmatpush1.msra.mxu0 0.0
        %1044 = vmatprep.subr.mxu0 0.0
        %1045 = vmatpush1.msra.mxu0 0.0
        %1046 = vmatprep.subr.mxu0 0.0
        %1047 = vmatpush1.msra.mxu0 0.0
        %1048 = vmatprep.subr.mxu0 0.0
        %1049 = vmatpush1.msra.mxu0 0.0
        %1050 = vmatprep.subr.mxu0 0.0
        %1051 = vmatpush1.msra.mxu0 0.0
        %1052 = vmatprep.subr.mxu0 0.0
        %1053 = vmatpush1.msra.mxu0 0.0
        %1054 = vmatprep.subr.mxu0 0.0
        %1055 = vmatpush1.msra.mxu0 0.0
        %1056 = vmatprep.subr.mxu0 0.0
        %1057 = vmatpush1.msra.mxu0 %v1021
        %1058 = vmatprep.subr.mxu0 0.0
        %1059 = vmatpush2.msra.mxu0 0.0
        %1060 = vmatprep.subr.mxu0 0.0
        %1061 = vmatpush2.msra.mxu0 0.0
        %1062 = vmatprep.subr.mxu0 0.0
        %1063 = vmatpush2.msra.mxu0 0.0
        %1064 = vmatprep.subr.mxu0 0.0
        %1065 = vmatpush2.msra.mxu0 0.0
        %1066 = vmatprep.subr.mxu0 0.0
        %1067 = vmatpush2.msra.mxu0 0.0
        %1068 = vmatprep.subr.mxu0 0.0
        %1069 = vmatpush2.msra.mxu0 0.0
        %1070 = vmatprep.subr.mxu0 0.0
        %1071 = vmatpush2.msra.mxu0 0.0
        %1072 = vmatprep.subr.mxu0 0.0
        %1073 = vmatpush2.msra.mxu0 0.0
        %1074 = vmatprep.subr.mxu0 0.0
        %1075 = vmatpush2.msra.mxu0 0.0
        %1076 = vmatprep.subr.mxu0 0.0
        %1077 = vmatpush2.msra.mxu0 0.0
        %1078 = vmatprep.subr.mxu0 0.0
        %1079 = vmatpush2.msra.mxu0 0.0
        %1080 = vmatprep.subr.mxu0 0.0
        %1081 = vmatpush2.msra.mxu0 0.0
        %1082 = vmatprep.subr.mxu0 0.0
        %1083 = vmatpush2.msra.mxu0 0.0
        %1084 = vmatprep.subr.mxu0 0.0
        %1085 = vmatpush2.msra.mxu0 0.0
        %1086 = vmatprep.subr.mxu0 0.0
        %1087 = vmatpush2.msra.mxu0 0.0
        %1088 = vmatprep.subr.mxu0 0.0
        %1089 = vmatpush2.msra.mxu0 0.0
        %1090 = vmatprep.mubr.f32.mxu0 0.0
        %1091 = vmatmul.mubr.f32.gmra.mxu0 %v1024
        %v1092 = vpop.f32.mrf.mxu0
        %v1093 = vadd.f32 0.0, %v1092
        %v1094 = vpop.f32.mrf.mxu0
        %1095 = vdwg.mxu0
        %v1096 = vrcp.pop %v782
        %v1097 = vrcp.pop %v785
        %v1098 = vrcp.pop %v788
        %v1099 = vrcp.pop %v791
        %v1100 = vmul.f32 %v865, %v1096
        %v1101 = vmul.f32 %v941, %v1097
        %v1102 = vmul.f32 %v1017, %v1098
        %v1103 = vmul.f32 %v1093, %v1099
        %v1104 = vld [vmem:[%s3] sm:$0xff]
        %v1105 = vld [vmem:[%s3 + $0x8] sm:$0xff]
        %v1106 = vld [vmem:[%s3 + $0x10] sm:$0xff]
        %v1107 = vld [vmem:[%s3 + $0x18] sm:$0xff]
        %v1108 = vld [vmem:[%s4] sm:$0x1]
        %v1110 = vlaneseq
        %v1111 = vshrl.u32 %v1110, 7
        %v1112 = vsub.s32 0, %v1111
        %v1113 = vrot.slane %v1108, %v1112
        %v1115 = vadd.f32 %v1113, %v328
        %v1117 = vsel %vm437, %v1100, 0
        %1119 = vmatprep.subr.mxu0 0.0
        %1120 = vmatpush1.msra.mxu0 0.0
        %1121 = vmatprep.subr.mxu0 0.0
        %1122 = vmatpush1.msra.mxu0 0.0
        %1123 = vmatprep.subr.mxu0 0.0
        %1124 = vmatpush1.msra.mxu0 0.0
        %1125 = vmatprep.subr.mxu0 0.0
        %1126 = vmatpush1.msra.mxu0 0.0
        %1127 = vmatprep.subr.mxu0 0.0
        %1128 = vmatpush1.msra.mxu0 0.0
        %1129 = vmatprep.subr.mxu0 0.0
        %1130 = vmatpush1.msra.mxu0 0.0
        %1131 = vmatprep.subr.mxu0 0.0
        %1132 = vmatpush1.msra.mxu0 0.0
        %1133 = vmatprep.subr.mxu0 0.0
        %1134 = vmatpush1.msra.mxu0 0.0
        %1135 = vmatprep.subr.mxu0 0.0
        %1136 = vmatpush1.msra.mxu0 0.0
        %1137 = vmatprep.subr.mxu0 0.0
        %1138 = vmatpush1.msra.mxu0 0.0
        %1139 = vmatprep.subr.mxu0 0.0
        %1140 = vmatpush1.msra.mxu0 0.0
        %1141 = vmatprep.subr.mxu0 0.0
        %1142 = vmatpush1.msra.mxu0 0.0
        %1143 = vmatprep.subr.mxu0 0.0
        %1144 = vmatpush1.msra.mxu0 0.0
        %1145 = vmatprep.subr.mxu0 0.0
        %1146 = vmatpush1.msra.mxu0 0.0
        %1147 = vmatprep.subr.mxu0 0.0
        %1148 = vmatpush1.msra.mxu0 0.0
        %1149 = vmatprep.subr.mxu0 0.0
        %1150 = vmatpush1.msra.mxu0 %v1104
        %1151 = vmatprep.subr.mxu0 0.0
        %1152 = vmatpush2.msra.mxu0 0.0
        %1153 = vmatprep.subr.mxu0 0.0
        %1154 = vmatpush2.msra.mxu0 0.0
        %1155 = vmatprep.subr.mxu0 0.0
        %1156 = vmatpush2.msra.mxu0 0.0
        %1157 = vmatprep.subr.mxu0 0.0
        %1158 = vmatpush2.msra.mxu0 0.0
        %1159 = vmatprep.subr.mxu0 0.0
        %1160 = vmatpush2.msra.mxu0 0.0
        %1161 = vmatprep.subr.mxu0 0.0
        %1162 = vmatpush2.msra.mxu0 0.0
        %1163 = vmatprep.subr.mxu0 0.0
        %1164 = vmatpush2.msra.mxu0 0.0
        %1165 = vmatprep.subr.mxu0 0.0
        %1166 = vmatpush2.msra.mxu0 0.0
        %1167 = vmatprep.subr.mxu0 0.0
        %1168 = vmatpush2.msra.mxu0 0.0
        %1169 = vmatprep.subr.mxu0 0.0
        %1170 = vmatpush2.msra.mxu0 0.0
        %1171 = vmatprep.subr.mxu0 0.0
        %1172 = vmatpush2.msra.mxu0 0.0
        %1173 = vmatprep.subr.mxu0 0.0
        %1174 = vmatpush2.msra.mxu0 0.0
        %1175 = vmatprep.subr.mxu0 0.0
        %1176 = vmatpush2.msra.mxu0 0.0
        %1177 = vmatprep.subr.mxu0 0.0
        %1178 = vmatpush2.msra.mxu0 0.0
        %1179 = vmatprep.subr.mxu0 0.0
        %1180 = vmatpush2.msra.mxu0 0.0
        %1181 = vmatprep.subr.mxu0 0.0
        %1182 = vmatpush2.msra.mxu0 0.0
        %1183 = vmatprep.mubr.f32.mxu0 0.0
        %1184 = vmatmul.mubr.f32.gmra.mxu0 %v1117
        %v1185 = vpop.f32.mrf.mxu0
        %v1186 = vadd.f32 0.0, %v1185
        %v1187 = vpop.f32.mrf.mxu0
        %1188 = vdwg.mxu0
        %v1189 = vadd.f32 %v1115, %v1186
        %v1191 = vsel %vm437, %v1101, 0
        %1193 = vmatprep.subr.mxu0 0.0
        %1194 = vmatpush1.msra.mxu0 0.0
        %1195 = vmatprep.subr.mxu0 0.0
        %1196 = vmatpush1.msra.mxu0 0.0
        %1197 = vmatprep.subr.mxu0 0.0
        %1198 = vmatpush1.msra.mxu0 0.0
        %1199 = vmatprep.subr.mxu0 0.0
        %1200 = vmatpush1.msra.mxu0 0.0
        %1201 = vmatprep.subr.mxu0 0.0
        %1202 = vmatpush1.msra.mxu0 0.0
        %1203 = vmatprep.subr.mxu0 0.0
        %1204 = vmatpush1.msra.mxu0 0.0
        %1205 = vmatprep.subr.mxu0 0.0
        %1206 = vmatpush1.msra.mxu0 0.0
        %1207 = vmatprep.subr.mxu0 0.0
        %1208 = vmatpush1.msra.mxu0 0.0
        %1209 = vmatprep.subr.mxu0 0.0
        %1210 = vmatpush1.msra.mxu0 0.0
        %1211 = vmatprep.subr.mxu0 0.0
        %1212 = vmatpush1.msra.mxu0 0.0
        %1213 = vmatprep.subr.mxu0 0.0
        %1214 = vmatpush1.msra.mxu0 0.0
        %1215 = vmatprep.subr.mxu0 0.0
        %1216 = vmatpush1.msra.mxu0 0.0
        %1217 = vmatprep.subr.mxu0 0.0
        %1218 = vmatpush1.msra.mxu0 0.0
        %1219 = vmatprep.subr.mxu0 0.0
        %1220 = vmatpush1.msra.mxu0 0.0
        %1221 = vmatprep.subr.mxu0 0.0
        %1222 = vmatpush1.msra.mxu0 0.0
        %1223 = vmatprep.subr.mxu0 0.0
        %1224 = vmatpush1.msra.mxu0 %v1105
        %1225 = vmatprep.subr.mxu0 0.0
        %1226 = vmatpush2.msra.mxu0 0.0
        %1227 = vmatprep.subr.mxu0 0.0
        %1228 = vmatpush2.msra.mxu0 0.0
        %1229 = vmatprep.subr.mxu0 0.0
        %1230 = vmatpush2.msra.mxu0 0.0
        %1231 = vmatprep.subr.mxu0 0.0
        %1232 = vmatpush2.msra.mxu0 0.0
        %1233 = vmatprep.subr.mxu0 0.0
        %1234 = vmatpush2.msra.mxu0 0.0
        %1235 = vmatprep.subr.mxu0 0.0
        %1236 = vmatpush2.msra.mxu0 0.0
        %1237 = vmatprep.subr.mxu0 0.0
        %1238 = vmatpush2.msra.mxu0 0.0
        %1239 = vmatprep.subr.mxu0 0.0
        %1240 = vmatpush2.msra.mxu0 0.0
        %1241 = vmatprep.subr.mxu0 0.0
        %1242 = vmatpush2.msra.mxu0 0.0
        %1243 = vmatprep.subr.mxu0 0.0
        %1244 = vmatpush2.msra.mxu0 0.0
        %1245 = vmatprep.subr.mxu0 0.0
        %1246 = vmatpush2.msra.mxu0 0.0
        %1247 = vmatprep.subr.mxu0 0.0
        %1248 = vmatpush2.msra.mxu0 0.0
        %1249 = vmatprep.subr.mxu0 0.0
        %1250 = vmatpush2.msra.mxu0 0.0
        %1251 = vmatprep.subr.mxu0 0.0
        %1252 = vmatpush2.msra.mxu0 0.0
        %1253 = vmatprep.subr.mxu0 0.0
        %1254 = vmatpush2.msra.mxu0 0.0
        %1255 = vmatprep.subr.mxu0 0.0
        %1256 = vmatpush2.msra.mxu0 0.0
        %1257 = vmatprep.mubr.f32.mxu0 0.0
        %1258 = vmatmul.mubr.f32.gmra.mxu0 %v1191
        %v1259 = vpop.f32.mrf.mxu0
        %v1260 = vadd.f32 0.0, %v1259
        %v1261 = vpop.f32.mrf.mxu0
        %1262 = vdwg.mxu0
        %v1263 = vadd.f32 %v1189, %v1260
        %v1265 = vsel %vm437, %v1102, 0
        %1267 = vmatprep.subr.mxu0 0.0
        %1268 = vmatpush1.msra.mxu0 0.0
        %1269 = vmatprep.subr.mxu0 0.0
        %1270 = vmatpush1.msra.mxu0 0.0
        %1271 = vmatprep.subr.mxu0 0.0
        %1272 = vmatpush1.msra.mxu0 0.0
        %1273 = vmatprep.subr.mxu0 0.0
        %1274 = vmatpush1.msra.mxu0 0.0
        %1275 = vmatprep.subr.mxu0 0.0
        %1276 = vmatpush1.msra.mxu0 0.0
        %1277 = vmatprep.subr.mxu0 0.0
        %1278 = vmatpush1.msra.mxu0 0.0
        %1279 = vmatprep.subr.mxu0 0.0
        %1280 = vmatpush1.msra.mxu0 0.0
        %1281 = vmatprep.subr.mxu0 0.0
        %1282 = vmatpush1.msra.mxu0 0.0
        %1283 = vmatprep.subr.mxu0 0.0
        %1284 = vmatpush1.msra.mxu0 0.0
        %1285 = vmatprep.subr.mxu0 0.0
        %1286 = vmatpush1.msra.mxu0 0.0
        %1287 = vmatprep.subr.mxu0 0.0
        %1288 = vmatpush1.msra.mxu0 0.0
        %1289 = vmatprep.subr.mxu0 0.0
        %1290 = vmatpush1.msra.mxu0 0.0
        %1291 = vmatprep.subr.mxu0 0.0
        %1292 = vmatpush1.msra.mxu0 0.0
        %1293 = vmatprep.subr.mxu0 0.0
        %1294 = vmatpush1.msra.mxu0 0.0
        %1295 = vmatprep.subr.mxu0 0.0
        %1296 = vmatpush1.msra.mxu0 0.0
        %1297 = vmatprep.subr.mxu0 0.0
        %1298 = vmatpush1.msra.mxu0 %v1106
        %1299 = vmatprep.subr.mxu0 0.0
        %1300 = vmatpush2.msra.mxu0 0.0
        %1301 = vmatprep.subr.mxu0 0.0
        %1302 = vmatpush2.msra.mxu0 0.0
        %1303 = vmatprep.subr.mxu0 0.0
        %1304 = vmatpush2.msra.mxu0 0.0
        %1305 = vmatprep.subr.mxu0 0.0
        %1306 = vmatpush2.msra.mxu0 0.0
        %1307 = vmatprep.subr.mxu0 0.0
        %1308 = vmatpush2.msra.mxu0 0.0
        %1309 = vmatprep.subr.mxu0 0.0
        %1310 = vmatpush2.msra.mxu0 0.0
        %1311 = vmatprep.subr.mxu0 0.0
        %1312 = vmatpush2.msra.mxu0 0.0
        %1313 = vmatprep.subr.mxu0 0.0
        %1314 = vmatpush2.msra.mxu0 0.0
        %1315 = vmatprep.subr.mxu0 0.0
        %1316 = vmatpush2.msra.mxu0 0.0
        %1317 = vmatprep.subr.mxu0 0.0
        %1318 = vmatpush2.msra.mxu0 0.0
        %1319 = vmatprep.subr.mxu0 0.0
        %1320 = vmatpush2.msra.mxu0 0.0
        %1321 = vmatprep.subr.mxu0 0.0
        %1322 = vmatpush2.msra.mxu0 0.0
        %1323 = vmatprep.subr.mxu0 0.0
        %1324 = vmatpush2.msra.mxu0 0.0
        %1325 = vmatprep.subr.mxu0 0.0
        %1326 = vmatpush2.msra.mxu0 0.0
        %1327 = vmatprep.subr.mxu0 0.0
        %1328 = vmatpush2.msra.mxu0 0.0
        %1329 = vmatprep.subr.mxu0 0.0
        %1330 = vmatpush2.msra.mxu0 0.0
        %1331 = vmatprep.mubr.f32.mxu0 0.0
        %1332 = vmatmul.mubr.f32.gmra.mxu0 %v1265
        %v1333 = vpop.f32.mrf.mxu0
        %v1334 = vadd.f32 0.0, %v1333
        %v1335 = vpop.f32.mrf.mxu0
        %1336 = vdwg.mxu0
        %v1337 = vadd.f32 %v1263, %v1334
        %v1339 = vsel %vm437, %v1103, 0
        %1341 = vmatprep.subr.mxu0 0.0
        %1342 = vmatpush1.msra.mxu0 0.0
        %1343 = vmatprep.subr.mxu0 0.0
        %1344 = vmatpush1.msra.mxu0 0.0
        %1345 = vmatprep.subr.mxu0 0.0
        %1346 = vmatpush1.msra.mxu0 0.0
        %1347 = vmatprep.subr.mxu0 0.0
        %1348 = vmatpush1.msra.mxu0 0.0
        %1349 = vmatprep.subr.mxu0 0.0
        %1350 = vmatpush1.msra.mxu0 0.0
        %1351 = vmatprep.subr.mxu0 0.0
        %1352 = vmatpush1.msra.mxu0 0.0
        %1353 = vmatprep.subr.mxu0 0.0
        %1354 = vmatpush1.msra.mxu0 0.0
        %1355 = vmatprep.subr.mxu0 0.0
        %1356 = vmatpush1.msra.mxu0 0.0
        %1357 = vmatprep.subr.mxu0 0.0
        %1358 = vmatpush1.msra.mxu0 0.0
        %1359 = vmatprep.subr.mxu0 0.0
        %1360 = vmatpush1.msra.mxu0 0.0
        %1361 = vmatprep.subr.mxu0 0.0
        %1362 = vmatpush1.msra.mxu0 0.0
        %1363 = vmatprep.subr.mxu0 0.0
        %1364 = vmatpush1.msra.mxu0 0.0
        %1365 = vmatprep.subr.mxu0 0.0
        %1366 = vmatpush1.msra.mxu0 0.0
        %1367 = vmatprep.subr.mxu0 0.0
        %1368 = vmatpush1.msra.mxu0 0.0
        %1369 = vmatprep.subr.mxu0 0.0
        %1370 = vmatpush1.msra.mxu0 0.0
        %1371 = vmatprep.subr.mxu0 0.0
        %1372 = vmatpush1.msra.mxu0 %v1107
        %1373 = vmatprep.subr.mxu0 0.0
        %1374 = vmatpush2.msra.mxu0 0.0
        %1375 = vmatprep.subr.mxu0 0.0
        %1376 = vmatpush2.msra.mxu0 0.0
        %1377 = vmatprep.subr.mxu0 0.0
        %1378 = vmatpush2.msra.mxu0 0.0
        %1379 = vmatprep.subr.mxu0 0.0
        %1380 = vmatpush2.msra.mxu0 0.0
        %1381 = vmatprep.subr.mxu0 0.0
        %1382 = vmatpush2.msra.mxu0 0.0
        %1383 = vmatprep.subr.mxu0 0.0
        %1384 = vmatpush2.msra.mxu0 0.0
        %1385 = vmatprep.subr.mxu0 0.0
        %1386 = vmatpush2.msra.mxu0 0.0
        %1387 = vmatprep.subr.mxu0 0.0
        %1388 = vmatpush2.msra.mxu0 0.0
        %1389 = vmatprep.subr.mxu0 0.0
        %1390 = vmatpush2.msra.mxu0 0.0
        %1391 = vmatprep.subr.mxu0 0.0
        %1392 = vmatpush2.msra.mxu0 0.0
        %1393 = vmatprep.subr.mxu0 0.0
        %1394 = vmatpush2.msra.mxu0 0.0
        %1395 = vmatprep.subr.mxu0 0.0
        %1396 = vmatpush2.msra.mxu0 0.0
        %1397 = vmatprep.subr.mxu0 0.0
        %1398 = vmatpush2.msra.mxu0 0.0
        %1399 = vmatprep.subr.mxu0 0.0
        %1400 = vmatpush2.msra.mxu0 0.0
        %1401 = vmatprep.subr.mxu0 0.0
        %1402 = vmatpush2.msra.mxu0 0.0
        %1403 = vmatprep.subr.mxu0 0.0
        %1404 = vmatpush2.msra.mxu0 0.0
        %1405 = vmatprep.mubr.f32.mxu0 0.0
        %1406 = vmatmul.mubr.f32.gmra.mxu0 %v1339
        %v1407 = vpop.f32.mrf.mxu0
        %v1408 = vadd.f32 0.0, %v1407
        %v1409 = vpop.f32.mrf.mxu0
        %1410 = vdwg.mxu0
        %v1411 = vadd.f32 %v1337, %v1408
        %v1412 = vsel %vm329, %v1411, 0.0
        %1413 = vadd.xlane.f32.xlu0 %v1412
        %v1414 = vpop.xlane.xlu0 %1413
        %v1415 = vmul.f32 %v1414, %v333
        %v1416 = vsub.f32 %v1411, %v1415
        %v1417 = vmul.f32 %v1416, %v1416
        %v1418 = vsel %vm329, %v1417, 0.0
        %1419 = vadd.xlane.f32.xlu0 %v1418
        %v1420 = vpop.xlane.xlu0 %1419
        %v1421 = vmul.f32 %v1420, %v333
        %v1422 = vadd.f32 %v1421, 1e-05
        %v1423 = vrsqrt.pop %v1422
        %v1424 = vmul.f32 %v1416, %v1423
        %v1425 = vld [vmem:[%s5] sm:$0xff]
        %v1426 = vld [vmem:[%s5 + $0x8] sm:$0xff]
        %v1427 = vld [vmem:[%s5 + $0x10] sm:$0xff]
        %v1428 = vld [vmem:[%s5 + $0x18] sm:$0xff]
        %v1429 = vld [vmem:[%s6] sm:$0x1]
        %v1431 = vlaneseq
        %v1432 = vshrl.u32 %v1431, 7
        %v1433 = vsub.s32 0, %v1432
        %v1434 = vrot.slane %v1429, %v1433
        %v1437 = vsel %vm329, %v1424, 0
        %1439 = vmatprep.subr.mxu0 0.0
        %1440 = vmatpush1.msra.mxu0 0.0
        %1441 = vmatprep.subr.mxu0 0.0
        %1442 = vmatpush1.msra.mxu0 0.0
        %1443 = vmatprep.subr.mxu0 0.0
        %1444 = vmatpush1.msra.mxu0 0.0
        %1445 = vmatprep.subr.mxu0 0.0
        %1446 = vmatpush1.msra.mxu0 0.0
        %1447 = vmatprep.subr.mxu0 0.0
        %1448 = vmatpush1.msra.mxu0 0.0
        %1449 = vmatprep.subr.mxu0 0.0
        %1450 = vmatpush1.msra.mxu0 0.0
        %1451 = vmatprep.subr.mxu0 0.0
        %1452 = vmatpush1.msra.mxu0 0.0
        %1453 = vmatprep.subr.mxu0 0.0
        %1454 = vmatpush1.msra.mxu0 0.0
        %1455 = vmatprep.subr.mxu0 0.0
        %1456 = vmatpush1.msra.mxu0 0.0
        %1457 = vmatprep.subr.mxu0 0.0
        %1458 = vmatpush1.msra.mxu0 0.0
        %1459 = vmatprep.subr.mxu0 0.0
        %1460 = vmatpush1.msra.mxu0 0.0
        %1461 = vmatprep.subr.mxu0 0.0
        %1462 = vmatpush1.msra.mxu0 0.0
        %1463 = vmatprep.subr.mxu0 0.0
        %1464 = vmatpush1.msra.mxu0 %v1428
        %1465 = vmatprep.subr.mxu0 0.0
        %1466 = vmatpush1.msra.mxu0 %v1427
        %1467 = vmatprep.subr.mxu0 0.0
        %1468 = vmatpush1.msra.mxu0 %v1426
        %1469 = vmatprep.subr.mxu0 0.0
        %1470 = vmatpush1.msra.mxu0 %v1425
        %1471 = vmatprep.subr.mxu0 0.0
        %1472 = vmatpush2.msra.mxu0 0.0
        %1473 = vmatprep.subr.mxu0 0.0
        %1474 = vmatpush2.msra.mxu0 0.0
        %1475 = vmatprep.subr.mxu0 0.0
        %1476 = vmatpush2.msra.mxu0 0.0
        %1477 = vmatprep.subr.mxu0 0.0
        %1478 = vmatpush2.msra.mxu0 0.0
        %1479 = vmatprep.subr.mxu0 0.0
        %1480 = vmatpush2.msra.mxu0 0.0
        %1481 = vmatprep.subr.mxu0 0.0
        %1482 = vmatpush2.msra.mxu0 0.0
        %1483 = vmatprep.subr.mxu0 0.0
        %1484 = vmatpush2.msra.mxu0 0.0
        %1485 = vmatprep.subr.mxu0 0.0
        %1486 = vmatpush2.msra.mxu0 0.0
        %1487 = vmatprep.subr.mxu0 0.0
        %1488 = vmatpush2.msra.mxu0 0.0
        %1489 = vmatprep.subr.mxu0 0.0
        %1490 = vmatpush2.msra.mxu0 0.0
        %1491 = vmatprep.subr.mxu0 0.0
        %1492 = vmatpush2.msra.mxu0 0.0
        %1493 = vmatprep.subr.mxu0 0.0
        %1494 = vmatpush2.msra.mxu0 0.0
        %1495 = vmatprep.subr.mxu0 0.0
        %1496 = vmatpush2.msra.mxu0 0.0
        %1497 = vmatprep.subr.mxu0 0.0
        %1498 = vmatpush2.msra.mxu0 0.0
        %1499 = vmatprep.subr.mxu0 0.0
        %1500 = vmatpush2.msra.mxu0 0.0
        %1501 = vmatprep.subr.mxu0 0.0
        %1502 = vmatpush2.msra.mxu0 0.0
        %1503 = vmatprep.mubr.f32.mxu0 0.0
        %1504 = vmatmul.mubr.f32.gmra.mxu0 %v1437
        %v1505 = vpop.f32.mrf.mxu0
        %v1506 = vadd.f32 %v1434, %v1505
        %v1507 = vpop.f32.mrf.mxu0
        %1508 = vdwg.mxu0
        %v1509 = vmul.f32 %v1506, %v1506
        %v1510 = vmul.f32 %v1506, %v1509
        %v1511 = vmul.f32 %v1510, 0.044715
        %v1512 = vadd.f32 %v1506, %v1511
        %v1513 = vmul.f32 %v1512, 0.7978846
        %v1514 = vtanh.pop %v1513
        %v1515 = vadd.f32 %v1514, 1.0
        %v1516 = vmul.f32 %v1515, 0.5
        %v1517 = vmul.f32 %v1506, %v1516
        %v1518 = vld [vmem:[%s7] sm:$0xff]
        %v1519 = vld [vmem:[%s7 + $0x8] sm:$0xff]
        %v1520 = vld [vmem:[%s7 + $0x10] sm:$0xff]
        %v1521 = vld [vmem:[%s7 + $0x18] sm:$0xff]
        %v1522 = vld [vmem:[%s7 + $0x20] sm:$0xff]
        %v1523 = vld [vmem:[%s7 + $0x28] sm:$0xff]
        %v1524 = vld [vmem:[%s7 + $0x30] sm:$0xff]
        %v1525 = vld [vmem:[%s7 + $0x38] sm:$0xff]
        %v1526 = vld [vmem:[%s8] sm:$0x1]
        %v1528 = vlaneseq
        %v1529 = vshrl.u32 %v1528, 7
        %v1530 = vsub.s32 0, %v1529
        %v1531 = vrot.slane %v1526, %v1530
        %vm1533 = vcmask 523264
        %v1535 = vsel %vm1533, %v1517, 0
        %1537 = vmatprep.subr.mxu0 0.0
        %1538 = vmatpush1.msra.mxu0 0.0
        %1539 = vmatprep.subr.mxu0 0.0
        %1540 = vmatpush1.msra.mxu0 0.0
        %1541 = vmatprep.subr.mxu0 0.0
        %1542 = vmatpush1.msra.mxu0 0.0
        %1543 = vmatprep.subr.mxu0 0.0
        %1544 = vmatpush1.msra.mxu0 0.0
        %1545 = vmatprep.subr.mxu0 0.0
        %1546 = vmatpush1.msra.mxu0 0.0
        %1547 = vmatprep.subr.mxu0 0.0
        %1548 = vmatpush1.msra.mxu0 0.0
        %1549 = vmatprep.subr.mxu0 0.0
        %1550 = vmatpush1.msra.mxu0 0.0
        %1551 = vmatprep.subr.mxu0 0.0
        %1552 = vmatpush1.msra.mxu0 0.0
        %1553 = vmatprep.subr.mxu0 0.0
        %1554 = vmatpush1.msra.mxu0 %v1525
        %1555 = vmatprep.subr.mxu0 0.0
        %1556 = vmatpush1.msra.mxu0 %v1524
        %1557 = vmatprep.subr.mxu0 0.0
        %1558 = vmatpush1.msra.mxu0 %v1523
        %1559 = vmatprep.subr.mxu0 0.0
        %1560 = vmatpush1.msra.mxu0 %v1522
        %1561 = vmatprep.subr.mxu0 0.0
        %1562 = vmatpush1.msra.mxu0 %v1521
        %1563 = vmatprep.subr.mxu0 0.0
        %1564 = vmatpush1.msra.mxu0 %v1520
        %1565 = vmatprep.subr.mxu0 0.0
        %1566 = vmatpush1.msra.mxu0 %v1519
        %1567 = vmatprep.subr.mxu0 0.0
        %1568 = vmatpush1.msra.mxu0 %v1518
        %1569 = vmatprep.subr.mxu0 0.0
        %1570 = vmatpush2.msra.mxu0 0.0
        %1571 = vmatprep.subr.mxu0 0.0
        %1572 = vmatpush2.msra.mxu0 0.0
        %1573 = vmatprep.subr.mxu0 0.0
        %1574 = vmatpush2.msra.mxu0 0.0
        %1575 = vmatprep.subr.mxu0 0.0
        %1576 = vmatpush2.msra.mxu0 0.0
        %1577 = vmatprep.subr.mxu0 0.0
        %1578 = vmatpush2.msra.mxu0 0.0
        %1579 = vmatprep.subr.mxu0 0.0
        %1580 = vmatpush2.msra.mxu0 0.0
        %1581 = vmatprep.subr.mxu0 0.0
        %1582 = vmatpush2.msra.mxu0 0.0
        %1583 = vmatprep.subr.mxu0 0.0
        %1584 = vmatpush2.msra.mxu0 0.0
        %1585 = vmatprep.subr.mxu0 0.0
        %1586 = vmatpush2.msra.mxu0 0.0
        %1587 = vmatprep.subr.mxu0 0.0
        %1588 = vmatpush2.msra.mxu0 0.0
        %1589 = vmatprep.subr.mxu0 0.0
        %1590 = vmatpush2.msra.mxu0 0.0
        %1591 = vmatprep.subr.mxu0 0.0
        %1592 = vmatpush2.msra.mxu0 0.0
        %1593 = vmatprep.subr.mxu0 0.0
        %1594 = vmatpush2.msra.mxu0 0.0
        %1595 = vmatprep.subr.mxu0 0.0
        %1596 = vmatpush2.msra.mxu0 0.0
        %1597 = vmatprep.subr.mxu0 0.0
        %1598 = vmatpush2.msra.mxu0 0.0
        %1599 = vmatprep.subr.mxu0 0.0
        %1600 = vmatpush2.msra.mxu0 0.0
        %1601 = vmatprep.mubr.f32.mxu0 0.0
        %1602 = vmatmul.mubr.f32.gmra.mxu0 %v1535
        %v1603 = vpop.f32.mrf.mxu0
        %v1604 = vadd.f32 %v1531, %v1603
        %v1605 = vpop.f32.mrf.mxu0
        %1606 = vdwg.mxu0
        %v1607 = vadd.f32 %v1604, %v1411
        %1608 = vst.msk [vmem:[%s323] sm:$0xff] %vm329, %v1607
        %s1609 = sand.u32 %s225, 1
        %s1610 = scalar_lea.sflag [#allocation3], %s1609
        %s1611 = sand.u32 %s225, 1
        %s1612 = smul.addr %s1611, 8
        %s1613 = scalar_lea.vmem [#allocation2], %s1612
        // Predicated region
        $region57: #{multihead_causal_attention.1} parent=55 // pred_check
          %p1614 = pneg %p235
        $region58: #{multihead_causal_attention.1} parent=55 // pred_check_branch
          %1616 = sbr.rel (%p1614) target = $region60
        $region59: #{multihead_causal_attention.1} parent=55 // pred_region
          %s1618 = ssub.s32 128, 128
          %1619 = vsyncadd %s1610, %s1618
          %s1620 = smul.addr %s23, 128
          %s1621 = scalar_lea.hbm %s9, %s1620
          %s1623 = sshll.u32 %s1613, 4
          %s1624 = int_to_ptr.vmem [resolvable:$true] %s1623
          %1626 = dma.vmem_to_hbm [thread:$0]  %s1624, 128, %s1621, %s1610
        $region60: #{multihead_causal_attention.1} parent=55 // pred_fallthru
          _
      $region56: #{multihead_causal_attention.1} parent=5 // pred_fallthru
        _
      %p1627 = scmp.le.s32.totalorder 2, %s18
      // Predicated region
      $region61: #{multihead_causal_attention.1} parent=5 // pred_check
        %p1628 = pneg %p1627
      $region62: #{multihead_causal_attention.1} parent=5 // pred_check_branch
        %1630 = sbr.rel (%p1628) target = $region64
      $region63: #{multihead_causal_attention.1} parent=5 // pred_region
        %s1631 = ssub.s32 %s18, 2
        // Predicated region
        $region65: #{multihead_causal_attention.1} parent=63 // pred_check
          %p1632 = pneg %p241
        $region66: #{multihead_causal_attention.1} parent=63 // pred_check_branch
          %1634 = sbr.rel (%p1632) target = $region68
        $region67: #{multihead_causal_attention.1} parent=63 // pred_region
          %s1635 = sand.u32 %s226, 1
          %s1636 = scalar_lea.sflag [#allocation3], %s1635
          %s1637 = sand.u32 %s226, 1
          %s1638 = smul.addr %s1637, 8
          %s1639 = scalar_lea.vmem [#allocation2], %s1638
          %1640 = dma.done %s1636, 128
        $region68: #{multihead_causal_attention.1} parent=63 // pred_fallthru
          _
      $region64: #{multihead_causal_attention.1} parent=5 // pred_fallthru
        _
    $region6: #{multihead_causal_attention.1} parent=1 // loop_footer
      %s22 = sadd.s32 1, %s18
    $region7: #{multihead_causal_attention.1} parent=1 // loop_footer_branch
      %17 = sbr.rel target = $region3
    $region8: #{multihead_causal_attention.1} parent=1 // loop_exit
      _
    %1641 = vsyncpa [#allocation3], 1
    %s1642 = scalar_lea.sflag [#allocation3], 1
    %1643 = vsyncpa %s1642, 1

</llo_original>
